<compile_context>
chip_gen: v7x
topology: tpu7x:2x2x1
jax: 0.10.0
libtpu: 0.0.40
codegen_flags: <defaults>
</compile_context>

<pallas_src>
import functools

import jax
import jax.numpy as jnp
from jax.experimental import pallas as pl
from jax.experimental.pallas import tpu as pltpu

VMEM = pltpu.MemorySpace.VMEM
SMEM = pltpu.MemorySpace.SMEM

LANE = 128          # TPU lane width: pad every channel-like dim to this
SUBLANE = 16        # bf16 sublane pack: pad the node dim to this
NEG_INF = -1e30     # scatter_max sentinel


def _rup(v, m):
    return -(-v // m) * m


def _pad2(a, rows, cols):
    return jnp.pad(a, ((0, rows - a.shape[0]), (0, cols - a.shape[1])))


# ----------------------------- fused Pallas kernel -----------------------------

def _hsp_gin_fused_kernel(eps, n_hops,
                          hop_w_ref,                            # SMEM [L*D] f32 softmaxed hop weights
                          x_ref,                                # [N, F]     bf16 node features
                          adj_ref,                              # [N, DN]    bf16 stacked adjacency
                          maskt_ref,                            # [N, G]     f32 pooling mask (T)
                          iw1_ref, ib1_ref, iw2_ref, ib2_ref,   # initial MLP (BN folded, w bf16 / b f32)
                          ilw_ref, ilb_ref,                     # initial linear
                          lw1_ref, lb1_ref, lw2_ref, lb2_ref,   # [L, ...] stacked GIN MLPs (BN folded)
                          llw_ref, llb_ref,                     # [L, ...] stacked per-layer linears
                          out_ref,                              # [G, K]     f32
                          xstack_ref):                          # scratch [DN, C] bf16
    n_pad = x_ref.shape[0]
    dn_pad = xstack_ref.shape[0]
    n_layers = lw1_ref.shape[0]
    n_graphs = maskt_ref.shape[1]

    # hoist per-graph membership masks out of the (L+1) pooling calls
    maskt = maskt_ref[...]                                      # [N, G]
    keep = [maskt[:, g:g + 1] > 0.5 for g in range(n_graphs)]   # G tiny / static

    def pool_max(z):
        # graph-wise scatter_max without materializing a [G, N, C] broadcast
        rows = [jnp.max(jnp.where(keep[g], z, NEG_INF), axis=0, keepdims=True)
                for g in range(n_graphs)]
        return jnp.concatenate(rows, axis=0)                    # [G, C] f32

    def mlp2(v, w1, b1, w2, b2):
        # Linear -> BN(eval, folded) -> ReLU -> Linear -> BN(folded) -> ReLU
        # bf16 x bf16 MXU matmuls, f32 accumulation, f32 bias + ReLU.
        h1 = jnp.maximum(
            jnp.dot(v.astype(jnp.bfloat16), w1,
                    preferred_element_type=jnp.float32) + b1, 0.0)
        return jnp.maximum(
            jnp.dot(h1.astype(jnp.bfloat16), w2,
                    preferred_element_type=jnp.float32) + b2, 0.0)

    # ---- initial MLP, initial per-node logits, pooled into the f32 accumulator ----
    h = mlp2(x_ref[...], iw1_ref[...], ib1_ref[...], iw2_ref[...], ib2_ref[...])
    z0 = jnp.dot(h.astype(jnp.bfloat16), ilw_ref[...],
                 preferred_element_type=jnp.float32) + ilb_ref[...]
    out_acc = pool_max(z0)                                      # [G, K] f32, kept in vregs

    adj = adj_ref[...]                                          # bf16 — no f32 upcast

    # zero only the lane-padding rows of the stacked-x scratch, once (garbage-safety);
    # the real D*N rows are fully overwritten every layer.
    if dn_pad > n_hops * n_pad:
        xstack_ref[n_hops * n_pad:dn_pad, :] = jnp.zeros(
            (dn_pad - n_hops * n_pad, xstack_ref.shape[1]), jnp.bfloat16)

    # TODO(synk): for deep models, replace the static unroll with lax.fori_loop over the
    #             stacked [L, ...] weights (carry h through a VMEM scratch) to bound
    #             vreg live ranges; unnecessary at L=2.
    for l in range(n_layers):                                   # static unroll; n_layers is small
        # hop aggregation as a single long-K bf16 matmul: agg = adj2d @ stack_d(w[l, d] * h)
        for d in range(n_hops):
            xstack_ref[d * n_pad:(d + 1) * n_pad, :] = (
                hop_w_ref[l * n_hops + d] * h).astype(jnp.bfloat16)
        agg = jnp.dot(adj, xstack_ref[...], preferred_element_type=jnp.float32)
        pre = (1.0 + eps) * h + agg                             # GIN update, inside_aggr='sum'
        h = mlp2(pre, lw1_ref[l], lb1_ref[l], lw2_ref[l], lb2_ref[l])
        # out += linear_l(pool_max(h))
        out_acc = out_acc + (
            jnp.dot(pool_max(h).astype(jnp.bfloat16), llw_ref[l],
                    preferred_element_type=jnp.float32) + llb_ref[l])

    out_ref[...] = out_acc                                      # single store of the tiny output


# ----------------------------- wrapper (prep + pallas_call) -----------------------------

def net_hsp_gin_forward(params, x, adj_hops, batch_mask, *, eps=0.0):
    n, f = x.shape
    d_hops = adj_hops.shape[0]
    g = batch_mask.shape[0]
    k = params['initial_linear']['w'].shape[1]
    n_layers = len(params['layers'])

    emb_dims = [params['initial_mlp']['w1'].shape[1], params['initial_mlp']['w2'].shape[1]]
    for lp in params['layers']:
        emb_dims += [lp['mlp']['w1'].shape[0], lp['mlp']['w1'].shape[1],
                     lp['mlp']['w2'].shape[1]]

    c_pad = _rup(max(emb_dims), LANE)
    f_pad = _rup(f, LANE)
    k_pad = _rup(k, LANE)
    n_pad = _rup(n, SUBLANE)
    dn_pad = _rup(d_hops * n_pad, LANE)

    def fold_mlp(p, in_pad):
        # fold eval-mode BatchNorm (scale s, shift t) into the adjacent Linear; pad to lanes.
        # Weights go to bf16 (MXU fast path); biases stay f32 (added post-accumulation).
        w1 = _pad2(p['w1'] * p['s1'][None, :], in_pad, c_pad).astype(jnp.bfloat16)
        b1 = _pad2((p['b1'] * p['s1'] + p['t1']).reshape(1, -1), 1, c_pad)
        w2 = _pad2(p['w2'] * p['s2'][None, :], c_pad, c_pad).astype(jnp.bfloat16)
        b2 = _pad2((p['b2'] * p['s2'] + p['t2']).reshape(1, -1), 1, c_pad)
        return w1, b1, w2, b2

    iw1, ib1, iw2, ib2 = fold_mlp(params['initial_mlp'], f_pad)
    ilw = _pad2(params['initial_linear']['w'], c_pad, k_pad).astype(jnp.bfloat16)
    ilb = _pad2(params['initial_linear']['b'].reshape(1, -1), 1, k_pad)

    layer_mlps = [fold_mlp(lp['mlp'], c_pad) for lp in params['layers']]
    lw1 = jnp.stack([m[0] for m in layer_mlps])
    lb1 = jnp.stack([m[1] for m in layer_mlps])
    lw2 = jnp.stack([m[2] for m in layer_mlps])
    lb2 = jnp.stack([m[3] for m in layer_mlps])
    llw = jnp.stack([_pad2(lp['linear']['w'], c_pad, k_pad).astype(jnp.bfloat16)
                     for lp in params['layers']])
    llb = jnp.stack([_pad2(lp['linear']['b'].reshape(1, -1), 1, k_pad)
                     for lp in params['layers']])
    # flat 1-D [L*D] SMEM operand (tens of bytes instead of a padded 2-D SMEM tile)
    hop_w = jnp.concatenate([jax.nn.softmax(lp['hop_coef']) for lp in params['layers']])

    # node features / adjacency / pooling mask, padded to lane & sublane granularity
    x_p = _pad2(x.astype(jnp.float32), n_pad, f_pad).astype(jnp.bfloat16)
    # TODO(synk): when the graph topology is static across calls, precompute/cache adj2d outside
    #             the per-call path; here it stays inside the same jit so XLA fuses the prep.
    adj_p = jnp.pad(adj_hops, ((0, 0), (0, n_pad - n), (0, n_pad - n)))
    adj2d = jnp.transpose(adj_p, (1, 0, 2)).reshape(n_pad, d_hops * n_pad)  # [dst, d*N+src]
    adj2d = _pad2(adj2d, n_pad, dn_pad).astype(jnp.bfloat16)    # bf16 exact for 0/1/edge counts
    maskt = _pad2(batch_mask.astype(jnp.float32), g, n_pad).T   # [N_pad, G]

    args = (hop_w, x_p, adj2d, maskt,
            iw1, ib1, iw2, ib2, ilw, ilb,
            lw1, lb1, lw2, lb2, llw, llb)

    flops = 2 * n_pad * c_pad * (f_pad + c_pad + k_pad)
    flops += n_layers * 2 * (n_pad * dn_pad * c_pad
                             + 2 * n_pad * c_pad * c_pad
                             + g * c_pad * k_pad)
    bytes_accessed = sum(int(a.size) * a.dtype.itemsize for a in args) + g * k_pad * 4

    out_padded = pl.pallas_call(
        functools.partial(_hsp_gin_fused_kernel, float(eps), d_hops),
        out_shape=jax.ShapeDtypeStruct((g, k_pad), jnp.float32),
        in_specs=[pl.BlockSpec(memory_space=SMEM)]
                 + [pl.BlockSpec(memory_space=VMEM)] * (len(args) - 1),
        out_specs=pl.BlockSpec(memory_space=VMEM),
        scratch_shapes=[pltpu.VMEM((dn_pad, c_pad), jnp.bfloat16)],
        cost_estimate=pl.CostEstimate(flops=int(flops), transcendentals=0,
                                      bytes_accessed=int(bytes_accessed)),
    )(*args)
    return out_padded[:, :k]


# ----------------------------- pure-JAX reference (f32, unpadded) -----------------------------

def net_hsp_gin_reference(params, x, adj_hops, batch_mask, eps=0.0):
    def mlp2(v, p):
        h = jnp.maximum((v @ p['w1'] + p['b1']) * p['s1'] + p['t1'], 0.0)
        return jnp.maximum((h @ p['w2'] + p['b2']) * p['s2'] + p['t2'], 0.0)

    def pool(v):
        masked = jnp.where(batch_mask[:, :, None] > 0.5, v[None, :, :], NEG_INF)
        return jnp.max(masked, axis=1)

    h = mlp2(x, params['initial_mlp'])
    out = pool(h @ params['initial_linear']['w'] + params['initial_linear']['b'])
    for lp in params['layers']:
        w = jax.nn.softmax(lp['hop_coef'])
        agg = jnp.einsum('d,dij,jc->ic', w, adj_hops, h)
        pre = (1.0 + eps) * h + agg
        h = mlp2(pre, lp['mlp'])
        out = out + (pool(h) @ lp['linear']['w'] + lp['linear']['b'])
    return out


# ----------------------------- parameters -----------------------------

def init_mlp_params(key, c_in, c_out, bn_eps=1e-5):
    k1, k2 = jax.random.split(key)
    return {
        'w1': jax.random.normal(k1, (c_in, c_out), jnp.float32) / jnp.sqrt(float(c_in)),
        'b1': jnp.zeros((c_out,), jnp.float32),
        # eval-mode BN with gamma=1, beta=0, running_mean=0, running_var=1
        's1': jnp.full((c_out,), 1.0 / jnp.sqrt(1.0 + bn_eps), jnp.float32),
        't1': jnp.zeros((c_out,), jnp.float32),
        'w2': jax.random.normal(k2, (c_out, c_out), jnp.float32) / jnp.sqrt(float(c_out)),
        'b2': jnp.zeros((c_out,), jnp.float32),
        's2': jnp.full((c_out,), 1.0 / jnp.sqrt(1.0 + bn_eps), jnp.float32),
        't2': jnp.zeros((c_out,), jnp.float32),
    }


if __name__ == "__main__":
    # Small shapes consistent with the module
    N, F, G = 32, 16, 2                 # nodes, node features, graphs in the batch
    EMB = [32, 32, 32]                  # emb_sizes -> num_layers = 2
    NUM_CLASSES = 8
    MAX_DIST = 3                        # max_distance (hops)
    E = 64                              # number of (multi-hop) edges

    key = jax.random.PRNGKey(0)
    kx, ke1, ke2, kh, kp = jax.random.split(key, 5)

    # data.x, data.batch
    x = jax.random.normal(kx, (N, F), jnp.float32)
    batch = jnp.concatenate([jnp.zeros(N // 2, jnp.int32), jnp.ones(N // 2, jnp.int32)])

    # data.edge_index / data.edge_weights (hop distances in 1..MAX_DIST), edges kept intra-graph
    src = jax.random.randint(ke1, (E,), 0, N)
    dst_raw = jax.random.randint(ke2, (E,), 0, N)
    dst = (src // (N // G)) * (N // G) + (dst_raw % (N // G))
    hops = jax.random.randint(kh, (E,), 1, MAX_DIST + 1)

    # dense per-hop adjacency and graph pooling mask (glue)
    adj_hops = jnp.zeros((MAX_DIST, N, N), jnp.float32).at[hops - 1, dst, src].add(1.0)
    batch_mask = (batch[None, :] == jnp.arange(G)[:, None]).astype(jnp.float32)

    # deterministic parameters
    keys = jax.random.split(kp, 2 + 3 * (len(EMB) - 1))
    params = {
        'initial_mlp': init_mlp_params(keys[0], F, EMB[0]),
        'initial_linear': {
            'w': jax.random.normal(keys[1], (EMB[0], NUM_CLASSES), jnp.float32)
                 / jnp.sqrt(float(EMB[0])),
            'b': jnp.zeros((NUM_CLASSES,), jnp.float32),
        },
        'layers': [],
    }
    for i in range(len(EMB) - 1):
        params['layers'].append({
            'hop_coef': jax.random.normal(keys[2 + 3 * i], (MAX_DIST,), jnp.float32),
            'mlp': init_mlp_params(keys[3 + 3 * i], EMB[i], EMB[i + 1]),
            'linear': {
                'w': jax.random.normal(keys[4 + 3 * i], (EMB[i + 1], NUM_CLASSES), jnp.float32)
                     / jnp.sqrt(float(EMB[i + 1])),
                'b': jnp.zeros((NUM_CLASSES,), jnp.float32),
            },
        })

    fwd = jax.jit(net_hsp_gin_forward)
    out = jax.block_until_ready(fwd(params, x, adj_hops, batch_mask))

    assert out.shape == (G, NUM_CLASSES)
    assert bool(jnp.all(jnp.isfinite(out)))

    # sanity-check the fused bf16-MXU kernel against the pure-JAX f32 reference
    # (tolerance scaled to output magnitude: bf16 weight/activation rounding is ~1e-2 relative)
    ref = net_hsp_gin_reference(params, x, adj_hops, batch_mask)
    max_err = float(jnp.max(jnp.abs(out - ref)))
    tol = 5e-2 * (1.0 + float(jnp.max(jnp.abs(ref))))
    assert max_err < tol, f"mismatch vs f32 reference: max |err| = {max_err} (tol {tol})"

    print("KERNEL_OK")
</pallas_src>

<mosaic_0001>
module attributes {stable_mosaic.version = 11 : i64} {
  func.func @_hsp_gin_fused_kernel(%arg0: memref<6xf32, #tpu.memory_space<smem>>, %arg1: memref<32x128xbf16, #tpu.memory_space<vmem>>, %arg2: memref<32x128xbf16, #tpu.memory_space<vmem>>, %arg3: memref<32x2xf32, #tpu.memory_space<vmem>>, %arg4: memref<128x128xbf16, #tpu.memory_space<vmem>>, %arg5: memref<1x128xf32, #tpu.memory_space<vmem>>, %arg6: memref<128x128xbf16, #tpu.memory_space<vmem>>, %arg7: memref<1x128xf32, #tpu.memory_space<vmem>>, %arg8: memref<128x128xbf16, #tpu.memory_space<vmem>>, %arg9: memref<1x128xf32, #tpu.memory_space<vmem>>, %arg10: memref<2x128x128xbf16, #tpu.memory_space<vmem>>, %arg11: memref<2x1x128xf32, #tpu.memory_space<vmem>>, %arg12: memref<2x128x128xbf16, #tpu.memory_space<vmem>>, %arg13: memref<2x1x128xf32, #tpu.memory_space<vmem>>, %arg14: memref<2x128x128xbf16, #tpu.memory_space<vmem>>, %arg15: memref<2x1x128xf32, #tpu.memory_space<vmem>>, %arg16: memref<2x128xf32, #tpu.memory_space<vmem>>, %arg17: memref<128x128xbf16, #tpu.memory_space<vmem>>) attributes {dimension_semantics = [], scalar_prefetch = 0 : i64, scratch_operands = 1 : i64, tpu.core_type = #tpu.core_type<tc>} {
    %c0 = arith.constant 0 : index
    %c0_0 = arith.constant 0 : index
    %0 = vector.load %arg3[%c0, %c0_0] : memref<32x2xf32, #tpu.memory_space<vmem>>, vector<32x2xf32>
    %1 = vector.extract_strided_slice %0 {offsets = [0, 0], sizes = [32, 1], strides = [1, 1]} : vector<32x2xf32> to vector<32x1xf32>
    %cst = arith.constant 5.000000e-01 : f32
    %2 = vector.broadcast %cst : f32 to vector<32x1xf32>
    %3 = arith.cmpf ogt, %1, %2 : vector<32x1xf32>
    %4 = vector.extract_strided_slice %0 {offsets = [0, 1], sizes = [32, 1], strides = [1, 1]} : vector<32x2xf32> to vector<32x1xf32>
    %cst_1 = arith.constant 5.000000e-01 : f32
    %5 = vector.broadcast %cst_1 : f32 to vector<32x1xf32>
    %6 = arith.cmpf ogt, %4, %5 : vector<32x1xf32>
    %c0_2 = arith.constant 0 : index
    %c0_3 = arith.constant 0 : index
    %7 = vector.load %arg1[%c0_2, %c0_3] : memref<32x128xbf16, #tpu.memory_space<vmem>>, vector<32x128xbf16>
    %c0_4 = arith.constant 0 : index
    %c0_5 = arith.constant 0 : index
    %8 = vector.load %arg4[%c0_4, %c0_5] : memref<128x128xbf16, #tpu.memory_space<vmem>>, vector<128x128xbf16>
    %c0_6 = arith.constant 0 : index
    %c0_7 = arith.constant 0 : index
    %9 = vector.load %arg5[%c0_6, %c0_7] : memref<1x128xf32, #tpu.memory_space<vmem>>, vector<1x128xf32>
    %c0_8 = arith.constant 0 : index
    %c0_9 = arith.constant 0 : index
    %10 = vector.load %arg6[%c0_8, %c0_9] : memref<128x128xbf16, #tpu.memory_space<vmem>>, vector<128x128xbf16>
    %c0_10 = arith.constant 0 : index
    %c0_11 = arith.constant 0 : index
    %11 = vector.load %arg7[%c0_10, %c0_11] : memref<1x128xf32, #tpu.memory_space<vmem>>, vector<1x128xf32>
    %cst_12 = arith.constant dense<0.000000e+00> : vector<32x128xf32>
    %12 = tpu.matmul %7, %8, %cst_12 {dimension_numbers = #tpu.dot_dimension_numbers<[1], [0], [0], [1], [0, 0, 1, 1], [], []>} : vector<32x128xbf16>, vector<128x128xbf16>, vector<32x128xf32> -> vector<32x128xf32>
    %13 = vector.broadcast %9 : vector<1x128xf32> to vector<32x128xf32>
    %14 = arith.addf %12, %13 : vector<32x128xf32>
    %cst_13 = arith.constant 0.000000e+00 : f32
    %15 = vector.broadcast %cst_13 : f32 to vector<32x128xf32>
    %16 = arith.maximumf %14, %15 : vector<32x128xf32>
    %17 = arith.truncf %16 : vector<32x128xf32> to vector<32x128xbf16>
    %cst_14 = arith.constant dense<0.000000e+00> : vector<32x128xf32>
    %18 = tpu.matmul %17, %10, %cst_14 {dimension_numbers = #tpu.dot_dimension_numbers<[1], [0], [0], [1], [0, 0, 1, 1], [], []>} : vector<32x128xbf16>, vector<128x128xbf16>, vector<32x128xf32> -> vector<32x128xf32>
    %19 = vector.broadcast %11 : vector<1x128xf32> to vector<32x128xf32>
    %20 = arith.addf %18, %19 : vector<32x128xf32>
    %cst_15 = arith.constant 0.000000e+00 : f32
    %21 = vector.broadcast %cst_15 : f32 to vector<32x128xf32>
    %22 = arith.maximumf %20, %21 : vector<32x128xf32>
    %23 = arith.truncf %22 : vector<32x128xf32> to vector<32x128xbf16>
    %c0_16 = arith.constant 0 : index
    %c0_17 = arith.constant 0 : index
    %24 = vector.load %arg8[%c0_16, %c0_17] : memref<128x128xbf16, #tpu.memory_space<vmem>>, vector<128x128xbf16>
    %cst_18 = arith.constant dense<0.000000e+00> : vector<32x128xf32>
    %25 = tpu.matmul %23, %24, %cst_18 {dimension_numbers = #tpu.dot_dimension_numbers<[1], [0], [0], [1], [0, 0, 1, 1], [], []>} : vector<32x128xbf16>, vector<128x128xbf16>, vector<32x128xf32> -> vector<32x128xf32>
    %c0_19 = arith.constant 0 : index
    %c0_20 = arith.constant 0 : index
    %26 = vector.load %arg9[%c0_19, %c0_20] : memref<1x128xf32, #tpu.memory_space<vmem>>, vector<1x128xf32>
    %27 = vector.broadcast %26 : vector<1x128xf32> to vector<32x128xf32>
    %28 = arith.addf %25, %27 : vector<32x128xf32>
    %cst_21 = arith.constant -1.000000e+30 : f32
    %29 = vector.shape_cast %3 : vector<32x1xi1> to vector<32x1xi1>
    %30 = vector.broadcast %29 : vector<32x1xi1> to vector<32x128xi1>
    %31 = vector.broadcast %cst_21 : f32 to vector<32x128xf32>
    %32 = arith.select %30, %28, %31 : vector<32x128xi1>, vector<32x128xf32>
    %cst_22 = arith.constant dense<0xFF800000> : vector<128xf32>
    %33 = vector.multi_reduction <maximumf>, %32, %cst_22 [0] : vector<32x128xf32> to vector<128xf32>
    %34 = vector.shape_cast %33 : vector<128xf32> to vector<1x128xf32>
    %cst_23 = arith.constant -1.000000e+30 : f32
    %35 = vector.shape_cast %6 : vector<32x1xi1> to vector<32x1xi1>
    %36 = vector.broadcast %35 : vector<32x1xi1> to vector<32x128xi1>
    %37 = vector.broadcast %cst_23 : f32 to vector<32x128xf32>
    %38 = arith.select %36, %28, %37 : vector<32x128xi1>, vector<32x128xf32>
    %cst_24 = arith.constant dense<0xFF800000> : vector<128xf32>
    %39 = vector.multi_reduction <maximumf>, %38, %cst_24 [0] : vector<32x128xf32> to vector<128xf32>
    %40 = vector.shape_cast %39 : vector<128xf32> to vector<1x128xf32>
    %41 = tpu.concatenate %34, %40 in 0 : vector<1x128xf32>, vector<1x128xf32> -> vector<2x128xf32>
    %c0_25 = arith.constant 0 : index
    %c0_26 = arith.constant 0 : index
    %42 = vector.load %arg2[%c0_25, %c0_26] : memref<32x128xbf16, #tpu.memory_space<vmem>>, vector<32x128xbf16>
    %cst_27 = arith.constant 0.000000e+00 : bf16
    %43 = vector.broadcast %cst_27 : bf16 to vector<32x128xbf16>
    %c96 = arith.constant 96 : index
    %c0_28 = arith.constant 0 : index
    %44 = vector.load %arg17[%c96, %c0_28] : memref<128x128xbf16, #tpu.memory_space<vmem>>, vector<32x128xbf16>
    tpu.vector_store %arg17[%c96, %c0_28], %43 {strides = array<i32>} : memref<128x128xbf16, #tpu.memory_space<vmem>>, vector<32x128xbf16>,
    %c0_29 = arith.constant 0 : index
    %45 = memref.load %arg0[%c0_29] : memref<6xf32, #tpu.memory_space<smem>>
    %46 = vector.broadcast %45 : f32 to vector<32x128xf32>
    %47 = arith.mulf %46, %22 : vector<32x128xf32>
    %48 = arith.truncf %47 : vector<32x128xf32> to vector<32x128xbf16>
    %c0_30 = arith.constant 0 : index
    %c0_31 = arith.constant 0 : index
    %49 = vector.load %arg17[%c0_30, %c0_31] : memref<128x128xbf16, #tpu.memory_space<vmem>>, vector<32x128xbf16>
    tpu.vector_store %arg17[%c0_30, %c0_31], %48 {strides = array<i32>} : memref<128x128xbf16, #tpu.memory_space<vmem>>, vector<32x128xbf16>,
    %c1 = arith.constant 1 : index
    %50 = memref.load %arg0[%c1] : memref<6xf32, #tpu.memory_space<smem>>
    %51 = vector.broadcast %50 : f32 to vector<32x128xf32>
    %52 = arith.mulf %51, %22 : vector<32x128xf32>
    %53 = arith.truncf %52 : vector<32x128xf32> to vector<32x128xbf16>
    %c32 = arith.constant 32 : index
    %c0_32 = arith.constant 0 : index
    %54 = vector.load %arg17[%c32, %c0_32] : memref<128x128xbf16, #tpu.memory_space<vmem>>, vector<32x128xbf16>
    tpu.vector_store %arg17[%c32, %c0_32], %53 {strides = array<i32>} : memref<128x128xbf16, #tpu.memory_space<vmem>>, vector<32x128xbf16>,
    %c2 = arith.constant 2 : index
    %55 = memref.load %arg0[%c2] : memref<6xf32, #tpu.memory_space<smem>>
    %56 = vector.broadcast %55 : f32 to vector<32x128xf32>
    %57 = arith.mulf %56, %22 : vector<32x128xf32>
    %58 = arith.truncf %57 : vector<32x128xf32> to vector<32x128xbf16>
    %c64 = arith.constant 64 : index
    %c0_33 = arith.constant 0 : index
    %59 = vector.load %arg17[%c64, %c0_33] : memref<128x128xbf16, #tpu.memory_space<vmem>>, vector<32x128xbf16>
    tpu.vector_store %arg17[%c64, %c0_33], %58 {strides = array<i32>} : memref<128x128xbf16, #tpu.memory_space<vmem>>, vector<32x128xbf16>,
    %c0_34 = arith.constant 0 : index
    %c0_35 = arith.constant 0 : index
    %60 = vector.load %arg17[%c0_34, %c0_35] : memref<128x128xbf16, #tpu.memory_space<vmem>>, vector<128x128xbf16>
    %cst_36 = arith.constant dense<0.000000e+00> : vector<32x128xf32>
    %61 = tpu.matmul %42, %60, %cst_36 {dimension_numbers = #tpu.dot_dimension_numbers<[1], [0], [0], [1], [0, 0, 1, 1], [], []>} : vector<32x128xbf16>, vector<128x128xbf16>, vector<32x128xf32> -> vector<32x128xf32>
    %cst_37 = arith.constant 1.000000e+00 : f32
    %62 = vector.broadcast %cst_37 : f32 to vector<32x128xf32>
    %63 = arith.mulf %62, %22 : vector<32x128xf32>
    %64 = arith.addf %63, %61 : vector<32x128xf32>
    %c0_38 = arith.constant 0 : index
    %c0_39 = arith.constant 0 : index
    %c0_40 = arith.constant 0 : index
    %65 = vector.load %arg10[%c0_38, %c0_39, %c0_40] : memref<2x128x128xbf16, #tpu.memory_space<vmem>>, vector<1x128x128xbf16>
    %66 = vector.shape_cast %65 : vector<1x128x128xbf16> to vector<128x128xbf16>
    %c0_41 = arith.constant 0 : index
    %c0_42 = arith.constant 0 : index
    %c0_43 = arith.constant 0 : index
    %67 = vector.load %arg11[%c0_41, %c0_42, %c0_43] : memref<2x1x128xf32, #tpu.memory_space<vmem>>, vector<1x1x128xf32>
    %68 = vector.shape_cast %67 : vector<1x1x128xf32> to vector<1x128xf32>
    %c0_44 = arith.constant 0 : index
    %c0_45 = arith.constant 0 : index
    %c0_46 = arith.constant 0 : index
    %69 = vector.load %arg12[%c0_44, %c0_45, %c0_46] : memref<2x128x128xbf16, #tpu.memory_space<vmem>>, vector<1x128x128xbf16>
    %70 = vector.shape_cast %69 : vector<1x128x128xbf16> to vector<128x128xbf16>
    %c0_47 = arith.constant 0 : index
    %c0_48 = arith.constant 0 : index
    %c0_49 = arith.constant 0 : index
    %71 = vector.load %arg13[%c0_47, %c0_48, %c0_49] : memref<2x1x128xf32, #tpu.memory_space<vmem>>, vector<1x1x128xf32>
    %72 = vector.shape_cast %71 : vector<1x1x128xf32> to vector<1x128xf32>
    %73 = arith.truncf %64 : vector<32x128xf32> to vector<32x128xbf16>
    %cst_50 = arith.constant dense<0.000000e+00> : vector<32x128xf32>
    %74 = tpu.matmul %73, %66, %cst_50 {dimension_numbers = #tpu.dot_dimension_numbers<[1], [0], [0], [1], [0, 0, 1, 1], [], []>} : vector<32x128xbf16>, vector<128x128xbf16>, vector<32x128xf32> -> vector<32x128xf32>
    %75 = vector.broadcast %68 : vector<1x128xf32> to vector<32x128xf32>
    %76 = arith.addf %74, %75 : vector<32x128xf32>
    %cst_51 = arith.constant 0.000000e+00 : f32
    %77 = vector.broadcast %cst_51 : f32 to vector<32x128xf32>
    %78 = arith.maximumf %76, %77 : vector<32x128xf32>
    %79 = arith.truncf %78 : vector<32x128xf32> to vector<32x128xbf16>
    %cst_52 = arith.constant dense<0.000000e+00> : vector<32x128xf32>
    %80 = tpu.matmul %79, %70, %cst_52 {dimension_numbers = #tpu.dot_dimension_numbers<[1], [0], [0], [1], [0, 0, 1, 1], [], []>} : vector<32x128xbf16>, vector<128x128xbf16>, vector<32x128xf32> -> vector<32x128xf32>
    %81 = vector.broadcast %72 : vector<1x128xf32> to vector<32x128xf32>
    %82 = arith.addf %80, %81 : vector<32x128xf32>
    %cst_53 = arith.constant 0.000000e+00 : f32
    %83 = vector.broadcast %cst_53 : f32 to vector<32x128xf32>
    %84 = arith.maximumf %82, %83 : vector<32x128xf32>
    %cst_54 = arith.constant -1.000000e+30 : f32
    %85 = vector.shape_cast %3 : vector<32x1xi1> to vector<32x1xi1>
    %86 = vector.broadcast %85 : vector<32x1xi1> to vector<32x128xi1>
    %87 = vector.broadcast %cst_54 : f32 to vector<32x128xf32>
    %88 = arith.select %86, %84, %87 : vector<32x128xi1>, vector<32x128xf32>
    %cst_55 = arith.constant dense<0xFF800000> : vector<128xf32>
    %89 = vector.multi_reduction <maximumf>, %88, %cst_55 [0] : vector<32x128xf32> to vector<128xf32>
    %90 = vector.shape_cast %89 : vector<128xf32> to vector<1x128xf32>
    %cst_56 = arith.constant -1.000000e+30 : f32
    %91 = vector.shape_cast %6 : vector<32x1xi1> to vector<32x1xi1>
    %92 = vector.broadcast %91 : vector<32x1xi1> to vector<32x128xi1>
    %93 = vector.broadcast %cst_56 : f32 to vector<32x128xf32>
    %94 = arith.select %92, %84, %93 : vector<32x128xi1>, vector<32x128xf32>
    %cst_57 = arith.constant dense<0xFF800000> : vector<128xf32>
    %95 = vector.multi_reduction <maximumf>, %94, %cst_57 [0] : vector<32x128xf32> to vector<128xf32>
    %96 = vector.shape_cast %95 : vector<128xf32> to vector<1x128xf32>
    %97 = tpu.concatenate %90, %96 in 0 : vector<1x128xf32>, vector<1x128xf32> -> vector<2x128xf32>
    %98 = arith.truncf %97 : vector<2x128xf32> to vector<2x128xbf16>
    %c0_58 = arith.constant 0 : index
    %c0_59 = arith.constant 0 : index
    %c0_60 = arith.constant 0 : index
    %99 = vector.load %arg14[%c0_58, %c0_59, %c0_60] : memref<2x128x128xbf16, #tpu.memory_space<vmem>>, vector<1x128x128xbf16>
    %100 = vector.shape_cast %99 : vector<1x128x128xbf16> to vector<128x128xbf16>
    %cst_61 = arith.constant dense<0.000000e+00> : vector<2x128xf32>
    %101 = tpu.matmul %98, %100, %cst_61 {dimension_numbers = #tpu.dot_dimension_numbers<[1], [0], [0], [1], [0, 0, 1, 1], [], []>} : vector<2x128xbf16>, vector<128x128xbf16>, vector<2x128xf32> -> vector<2x128xf32>
    %c0_62 = arith.constant 0 : index
    %c0_63 = arith.constant 0 : index
    %c0_64 = arith.constant 0 : index
    %102 = vector.load %arg15[%c0_62, %c0_63, %c0_64] : memref<2x1x128xf32, #tpu.memory_space<vmem>>, vector<1x1x128xf32>
    %103 = vector.shape_cast %102 : vector<1x1x128xf32> to vector<1x128xf32>
    %104 = vector.broadcast %103 : vector<1x128xf32> to vector<2x128xf32>
    %105 = arith.addf %101, %104 : vector<2x128xf32>
    %106 = arith.addf %41, %105 : vector<2x128xf32>
    %c3 = arith.constant 3 : index
    %107 = memref.load %arg0[%c3] : memref<6xf32, #tpu.memory_space<smem>>
    %108 = vector.broadcast %107 : f32 to vector<32x128xf32>
    %109 = arith.mulf %108, %84 : vector<32x128xf32>
    %110 = arith.truncf %109 : vector<32x128xf32> to vector<32x128xbf16>
    %c0_65 = arith.constant 0 : index
    %c0_66 = arith.constant 0 : index
    %111 = vector.load %arg17[%c0_65, %c0_66] : memref<128x128xbf16, #tpu.memory_space<vmem>>, vector<32x128xbf16>
    tpu.vector_store %arg17[%c0_65, %c0_66], %110 {strides = array<i32>} : memref<128x128xbf16, #tpu.memory_space<vmem>>, vector<32x128xbf16>,
    %c4 = arith.constant 4 : index
    %112 = memref.load %arg0[%c4] : memref<6xf32, #tpu.memory_space<smem>>
    %113 = vector.broadcast %112 : f32 to vector<32x128xf32>
    %114 = arith.mulf %113, %84 : vector<32x128xf32>
    %115 = arith.truncf %114 : vector<32x128xf32> to vector<32x128xbf16>
    %c32_67 = arith.constant 32 : index
    %c0_68 = arith.constant 0 : index
    %116 = vector.load %arg17[%c32_67, %c0_68] : memref<128x128xbf16, #tpu.memory_space<vmem>>, vector<32x128xbf16>
    tpu.vector_store %arg17[%c32_67, %c0_68], %115 {strides = array<i32>} : memref<128x128xbf16, #tpu.memory_space<vmem>>, vector<32x128xbf16>,
    %c5 = arith.constant 5 : index
    %117 = memref.load %arg0[%c5] : memref<6xf32, #tpu.memory_space<smem>>
    %118 = vector.broadcast %117 : f32 to vector<32x128xf32>
    %119 = arith.mulf %118, %84 : vector<32x128xf32>
    %120 = arith.truncf %119 : vector<32x128xf32> to vector<32x128xbf16>
    %c64_69 = arith.constant 64 : index
    %c0_70 = arith.constant 0 : index
    %121 = vector.load %arg17[%c64_69, %c0_70] : memref<128x128xbf16, #tpu.memory_space<vmem>>, vector<32x128xbf16>
    tpu.vector_store %arg17[%c64_69, %c0_70], %120 {strides = array<i32>} : memref<128x128xbf16, #tpu.memory_space<vmem>>, vector<32x128xbf16>,
    %c0_71 = arith.constant 0 : index
    %c0_72 = arith.constant 0 : index
    %122 = vector.load %arg17[%c0_71, %c0_72] : memref<128x128xbf16, #tpu.memory_space<vmem>>, vector<128x128xbf16>
    %cst_73 = arith.constant dense<0.000000e+00> : vector<32x128xf32>
    %123 = tpu.matmul %42, %122, %cst_73 {dimension_numbers = #tpu.dot_dimension_numbers<[1], [0], [0], [1], [0, 0, 1, 1], [], []>} : vector<32x128xbf16>, vector<128x128xbf16>, vector<32x128xf32> -> vector<32x128xf32>
    %cst_74 = arith.constant 1.000000e+00 : f32
    %124 = vector.broadcast %cst_74 : f32 to vector<32x128xf32>
    %125 = arith.mulf %124, %84 : vector<32x128xf32>
    %126 = arith.addf %125, %123 : vector<32x128xf32>
    %c1_75 = arith.constant 1 : index
    %c0_76 = arith.constant 0 : index
    %c0_77 = arith.constant 0 : index
    %127 = vector.load %arg10[%c1_75, %c0_76, %c0_77] : memref<2x128x128xbf16, #tpu.memory_space<vmem>>, vector<1x128x128xbf16>
    %128 = vector.shape_cast %127 : vector<1x128x128xbf16> to vector<128x128xbf16>
    %c1_78 = arith.constant 1 : index
    %c0_79 = arith.constant 0 : index
    %c0_80 = arith.constant 0 : index
    %129 = vector.load %arg11[%c1_78, %c0_79, %c0_80] : memref<2x1x128xf32, #tpu.memory_space<vmem>>, vector<1x1x128xf32>
    %130 = vector.shape_cast %129 : vector<1x1x128xf32> to vector<1x128xf32>
    %c1_81 = arith.constant 1 : index
    %c0_82 = arith.constant 0 : index
    %c0_83 = arith.constant 0 : index
    %131 = vector.load %arg12[%c1_81, %c0_82, %c0_83] : memref<2x128x128xbf16, #tpu.memory_space<vmem>>, vector<1x128x128xbf16>
    %132 = vector.shape_cast %131 : vector<1x128x128xbf16> to vector<128x128xbf16>
    %c1_84 = arith.constant 1 : index
    %c0_85 = arith.constant 0 : index
    %c0_86 = arith.constant 0 : index
    %133 = vector.load %arg13[%c1_84, %c0_85, %c0_86] : memref<2x1x128xf32, #tpu.memory_space<vmem>>, vector<1x1x128xf32>
    %134 = vector.shape_cast %133 : vector<1x1x128xf32> to vector<1x128xf32>
    %135 = arith.truncf %126 : vector<32x128xf32> to vector<32x128xbf16>
    %cst_87 = arith.constant dense<0.000000e+00> : vector<32x128xf32>
    %136 = tpu.matmul %135, %128, %cst_87 {dimension_numbers = #tpu.dot_dimension_numbers<[1], [0], [0], [1], [0, 0, 1, 1], [], []>} : vector<32x128xbf16>, vector<128x128xbf16>, vector<32x128xf32> -> vector<32x128xf32>
    %137 = vector.broadcast %130 : vector<1x128xf32> to vector<32x128xf32>
    %138 = arith.addf %136, %137 : vector<32x128xf32>
    %cst_88 = arith.constant 0.000000e+00 : f32
    %139 = vector.broadcast %cst_88 : f32 to vector<32x128xf32>
    %140 = arith.maximumf %138, %139 : vector<32x128xf32>
    %141 = arith.truncf %140 : vector<32x128xf32> to vector<32x128xbf16>
    %cst_89 = arith.constant dense<0.000000e+00> : vector<32x128xf32>
    %142 = tpu.matmul %141, %132, %cst_89 {dimension_numbers = #tpu.dot_dimension_numbers<[1], [0], [0], [1], [0, 0, 1, 1], [], []>} : vector<32x128xbf16>, vector<128x128xbf16>, vector<32x128xf32> -> vector<32x128xf32>
    %143 = vector.broadcast %134 : vector<1x128xf32> to vector<32x128xf32>
    %144 = arith.addf %142, %143 : vector<32x128xf32>
    %cst_90 = arith.constant 0.000000e+00 : f32
    %145 = vector.broadcast %cst_90 : f32 to vector<32x128xf32>
    %146 = arith.maximumf %144, %145 : vector<32x128xf32>
    %cst_91 = arith.constant -1.000000e+30 : f32
    %147 = vector.shape_cast %3 : vector<32x1xi1> to vector<32x1xi1>
    %148 = vector.broadcast %147 : vector<32x1xi1> to vector<32x128xi1>
    %149 = vector.broadcast %cst_91 : f32 to vector<32x128xf32>
    %150 = arith.select %148, %146, %149 : vector<32x128xi1>, vector<32x128xf32>
    %cst_92 = arith.constant dense<0xFF800000> : vector<128xf32>
    %151 = vector.multi_reduction <maximumf>, %150, %cst_92 [0] : vector<32x128xf32> to vector<128xf32>
    %152 = vector.shape_cast %151 : vector<128xf32> to vector<1x128xf32>
    %cst_93 = arith.constant -1.000000e+30 : f32
    %153 = vector.shape_cast %6 : vector<32x1xi1> to vector<32x1xi1>
    %154 = vector.broadcast %153 : vector<32x1xi1> to vector<32x128xi1>
    %155 = vector.broadcast %cst_93 : f32 to vector<32x128xf32>
    %156 = arith.select %154, %146, %155 : vector<32x128xi1>, vector<32x128xf32>
    %cst_94 = arith.constant dense<0xFF800000> : vector<128xf32>
    %157 = vector.multi_reduction <maximumf>, %156, %cst_94 [0] : vector<32x128xf32> to vector<128xf32>
    %158 = vector.shape_cast %157 : vector<128xf32> to vector<1x128xf32>
    %159 = tpu.concatenate %152, %158 in 0 : vector<1x128xf32>, vector<1x128xf32> -> vector<2x128xf32>
    %160 = arith.truncf %159 : vector<2x128xf32> to vector<2x128xbf16>
    %c1_95 = arith.constant 1 : index
    %c0_96 = arith.constant 0 : index
    %c0_97 = arith.constant 0 : index
    %161 = vector.load %arg14[%c1_95, %c0_96, %c0_97] : memref<2x128x128xbf16, #tpu.memory_space<vmem>>, vector<1x128x128xbf16>
    %162 = vector.shape_cast %161 : vector<1x128x128xbf16> to vector<128x128xbf16>
    %cst_98 = arith.constant dense<0.000000e+00> : vector<2x128xf32>
    %163 = tpu.matmul %160, %162, %cst_98 {dimension_numbers = #tpu.dot_dimension_numbers<[1], [0], [0], [1], [0, 0, 1, 1], [], []>} : vector<2x128xbf16>, vector<128x128xbf16>, vector<2x128xf32> -> vector<2x128xf32>
    %c1_99 = arith.constant 1 : index
    %c0_100 = arith.constant 0 : index
    %c0_101 = arith.constant 0 : index
    %164 = vector.load %arg15[%c1_99, %c0_100, %c0_101] : memref<2x1x128xf32, #tpu.memory_space<vmem>>, vector<1x1x128xf32>
    %165 = vector.shape_cast %164 : vector<1x1x128xf32> to vector<1x128xf32>
    %166 = vector.broadcast %165 : vector<1x128xf32> to vector<2x128xf32>
    %167 = arith.addf %163, %166 : vector<2x128xf32>
    %168 = arith.addf %106, %167 : vector<2x128xf32>
    %c0_102 = arith.constant 0 : index
    %c0_103 = arith.constant 0 : index
    %169 = vector.load %arg16[%c0_102, %c0_103] : memref<2x128xf32, #tpu.memory_space<vmem>>, vector<2x128xf32>
    tpu.vector_store %arg16[%c0_102, %c0_103], %168 {strides = array<i32>} : memref<2x128xf32, #tpu.memory_space<vmem>>, vector<2x128xf32>,
    return
  }
}

</mosaic_0001>

<llo_original>
// kernel: net_hsp_gin_forward.1
$region0: #{net_hsp_gin_forward.1}
  #allocation0 [shape = 'u32[]', space=smem, size = 0x4, offset = 0x4, fixed_abs, tag = 'smem constant byte address 0x4 - core index']
  #allocation1 [shape = 'u32[144,128]{1,0:T(1,128)}', space=vmem, size = 0x12000, scoped, tag = 'internal scratch']
  #allocation2 [shape = 'bf16[128,128]{1,0:T(16,128)(2,1)}', space=vmem, size = 0x8000, scoped, tag = 'scratch operand']
  %s0 = inlined_call_operand.vmem [shape: f32[6], index: 0, kind: input, shape index: {}]
  %s1 = inlined_call_operand.vmem [shape: bf16[32,128], index: 1, kind: input, shape index: {}]
  %s2 = inlined_call_operand.vmem [shape: bf16[32,128], index: 2, kind: input, shape index: {}]
  %s3 = inlined_call_operand.vmem [shape: f32[32,2], index: 3, kind: input, shape index: {}]
  %s4 = inlined_call_operand.vmem [shape: bf16[128,128], index: 4, kind: input, shape index: {}]
  %s5 = inlined_call_operand.vmem [shape: f32[1,128], index: 5, kind: input, shape index: {}]
  %s6 = inlined_call_operand.vmem [shape: bf16[128,128], index: 6, kind: input, shape index: {}]
  %s7 = inlined_call_operand.vmem [shape: f32[1,128], index: 7, kind: input, shape index: {}]
  %s8 = inlined_call_operand.vmem [shape: bf16[128,128], index: 8, kind: input, shape index: {}]
  %s9 = inlined_call_operand.vmem [shape: f32[1,128], index: 9, kind: input, shape index: {}]
  %s10 = inlined_call_operand.vmem [shape: bf16[2,128,128], index: 10, kind: input, shape index: {}]
  %s11 = inlined_call_operand.vmem [shape: f32[2,1,128], index: 11, kind: input, shape index: {}]
  %s12 = inlined_call_operand.vmem [shape: bf16[2,128,128], index: 12, kind: input, shape index: {}]
  %s13 = inlined_call_operand.vmem [shape: f32[2,1,128], index: 13, kind: input, shape index: {}]
  %s14 = inlined_call_operand.vmem [shape: bf16[2,128,128], index: 14, kind: input, shape index: {}]
  %s15 = inlined_call_operand.vmem [shape: f32[2,1,128], index: 15, kind: input, shape index: {}]
  %s16 = inlined_call_operand.hbm [shape: f32[2,128], index: 16, kind: output, shape index: {}]
  %s17 = sld [smem:[#allocation0]]
  $region78: #{net_hsp_gin_forward.1} parent=0
    _
  %s19 = ssub.s32 1, %s17
  %s20 = scalar_select 0, %s19, %s17
  $region1: #{net_hsp_gin_forward.1} parent=0
    #allocation3 [shape = 'u8[512]{0}', space=smem, size = 0x200, scoped, tag = 'input window, operand 0, single buffered']
    #allocation4 [shape = 's32[1]{0}', space=sflag, size = 0x4, scoped, tag = 'scoped memory for net_hsp_gin_forward.1']
    #allocation5 [shape = 's32[1]{0}', space=sflag, size = 0x4, scoped, tag = 'scoped memory for net_hsp_gin_forward.1']
    #allocation6 [shape = 'u8[1024]{0}', space=vmem, size = 0x400, scoped, tag = 'output window, operand 0, single buffered']
    %21 = vsyncpa [#allocation5], 0
    %22 = vsyncpa [#allocation4], 0
    // Predicated region
    $region2: #{net_hsp_gin_forward.1} parent=1 // pred_check
      _
    $region3: #{net_hsp_gin_forward.1} parent=1 // pred_check_branch
      %24 = sbr.rel (0) target = $region5
    $region4: #{net_hsp_gin_forward.1} parent=1 // pred_region
      %s26 = ssub.s32 16, 16
      %27 = vsyncadd [#allocation5], %s26
      %s29 = sshll.u32 %s0, 4
      %s30 = int_to_ptr.vmem [resolvable:$true] %s29
      %32 = dma.vmem_to_smem %s30, 16, [#allocation3], [#allocation5]
    $region5: #{net_hsp_gin_forward.1} parent=1 // pred_fallthru
      _
    // Predicated region
    $region6: #{net_hsp_gin_forward.1} parent=1 // pred_check
      _
    $region7: #{net_hsp_gin_forward.1} parent=1 // pred_check_branch
      %34 = sbr.rel (0) target = $region9
    $region8: #{net_hsp_gin_forward.1} parent=1 // pred_region
      _
    $region9: #{net_hsp_gin_forward.1} parent=1 // pred_fallthru
      _
    // Predicated region
    $region10: #{net_hsp_gin_forward.1} parent=1 // pred_check
      _
    $region11: #{net_hsp_gin_forward.1} parent=1 // pred_check_branch
      %36 = sbr.rel (0) target = $region13
    $region12: #{net_hsp_gin_forward.1} parent=1 // pred_region
      _
    $region13: #{net_hsp_gin_forward.1} parent=1 // pred_fallthru
      _
    // Predicated region
    $region14: #{net_hsp_gin_forward.1} parent=1 // pred_check
      _
    $region15: #{net_hsp_gin_forward.1} parent=1 // pred_check_branch
      %38 = sbr.rel (0) target = $region17
    $region16: #{net_hsp_gin_forward.1} parent=1 // pred_region
      _
    $region17: #{net_hsp_gin_forward.1} parent=1 // pred_fallthru
      _
    // Predicated region
    $region18: #{net_hsp_gin_forward.1} parent=1 // pred_check
      _
    $region19: #{net_hsp_gin_forward.1} parent=1 // pred_check_branch
      %40 = sbr.rel (0) target = $region21
    $region20: #{net_hsp_gin_forward.1} parent=1 // pred_region
      _
    $region21: #{net_hsp_gin_forward.1} parent=1 // pred_fallthru
      _
    // Predicated region
    $region22: #{net_hsp_gin_forward.1} parent=1 // pred_check
      _
    $region23: #{net_hsp_gin_forward.1} parent=1 // pred_check_branch
      %42 = sbr.rel (0) target = $region25
    $region24: #{net_hsp_gin_forward.1} parent=1 // pred_region
      _
    $region25: #{net_hsp_gin_forward.1} parent=1 // pred_fallthru
      _
    // Predicated region
    $region26: #{net_hsp_gin_forward.1} parent=1 // pred_check
      _
    $region27: #{net_hsp_gin_forward.1} parent=1 // pred_check_branch
      %44 = sbr.rel (0) target = $region29
    $region28: #{net_hsp_gin_forward.1} parent=1 // pred_region
      _
    $region29: #{net_hsp_gin_forward.1} parent=1 // pred_fallthru
      _
    // Predicated region
    $region30: #{net_hsp_gin_forward.1} parent=1 // pred_check
      _
    $region31: #{net_hsp_gin_forward.1} parent=1 // pred_check_branch
      %46 = sbr.rel (0) target = $region33
    $region32: #{net_hsp_gin_forward.1} parent=1 // pred_region
      _
    $region33: #{net_hsp_gin_forward.1} parent=1 // pred_fallthru
      _
    // Predicated region
    $region34: #{net_hsp_gin_forward.1} parent=1 // pred_check
      _
    $region35: #{net_hsp_gin_forward.1} parent=1 // pred_check_branch
      %48 = sbr.rel (0) target = $region37
    $region36: #{net_hsp_gin_forward.1} parent=1 // pred_region
      _
    $region37: #{net_hsp_gin_forward.1} parent=1 // pred_fallthru
      _
    // Predicated region
    $region38: #{net_hsp_gin_forward.1} parent=1 // pred_check
      _
    $region39: #{net_hsp_gin_forward.1} parent=1 // pred_check_branch
      %50 = sbr.rel (0) target = $region41
    $region40: #{net_hsp_gin_forward.1} parent=1 // pred_region
      _
    $region41: #{net_hsp_gin_forward.1} parent=1 // pred_fallthru
      _
    // Predicated region
    $region42: #{net_hsp_gin_forward.1} parent=1 // pred_check
      _
    $region43: #{net_hsp_gin_forward.1} parent=1 // pred_check_branch
      %52 = sbr.rel (0) target = $region45
    $region44: #{net_hsp_gin_forward.1} parent=1 // pred_region
      _
    $region45: #{net_hsp_gin_forward.1} parent=1 // pred_fallthru
      _
    // Predicated region
    $region46: #{net_hsp_gin_forward.1} parent=1 // pred_check
      _
    $region47: #{net_hsp_gin_forward.1} parent=1 // pred_check_branch
      %54 = sbr.rel (0) target = $region49
    $region48: #{net_hsp_gin_forward.1} parent=1 // pred_region
      _
    $region49: #{net_hsp_gin_forward.1} parent=1 // pred_fallthru
      _
    // Predicated region
    $region50: #{net_hsp_gin_forward.1} parent=1 // pred_check
      _
    $region51: #{net_hsp_gin_forward.1} parent=1 // pred_check_branch
      %56 = sbr.rel (0) target = $region53
    $region52: #{net_hsp_gin_forward.1} parent=1 // pred_region
      _
    $region53: #{net_hsp_gin_forward.1} parent=1 // pred_fallthru
      _
    // Predicated region
    $region54: #{net_hsp_gin_forward.1} parent=1 // pred_check
      _
    $region55: #{net_hsp_gin_forward.1} parent=1 // pred_check_branch
      %58 = sbr.rel (0) target = $region57
    $region56: #{net_hsp_gin_forward.1} parent=1 // pred_region
      _
    $region57: #{net_hsp_gin_forward.1} parent=1 // pred_fallthru
      _
    // Predicated region
    $region58: #{net_hsp_gin_forward.1} parent=1 // pred_check
      _
    $region59: #{net_hsp_gin_forward.1} parent=1 // pred_check_branch
      %60 = sbr.rel (0) target = $region61
    $region60: #{net_hsp_gin_forward.1} parent=1 // pred_region
      _
    $region61: #{net_hsp_gin_forward.1} parent=1 // pred_fallthru
      _
    // Predicated region
    $region62: #{net_hsp_gin_forward.1} parent=1 // pred_check
      _
    $region63: #{net_hsp_gin_forward.1} parent=1 // pred_check_branch
      %62 = sbr.rel (0) target = $region65
    $region64: #{net_hsp_gin_forward.1} parent=1 // pred_region
      _
    $region65: #{net_hsp_gin_forward.1} parent=1 // pred_fallthru
      _
    // Predicated region
    $region66: #{net_hsp_gin_forward.1} parent=1 // pred_check
      _
    $region67: #{net_hsp_gin_forward.1} parent=1 // pred_check_branch
      %64 = sbr.rel (0) target = $region69
    $region68: #{net_hsp_gin_forward.1} parent=1 // pred_region
      %65 = dma.done [#allocation5], 16
    $region69: #{net_hsp_gin_forward.1} parent=1 // pred_fallthru
      _
    %66 = sfence
    %v68 = vld [vmem:[%s3] sm:$0xff]
    %v69 = vld [vmem:[%s3 + $0x8] sm:$0xff]
    %v70 = vld [vmem:[%s3 + $0x10] sm:$0xff]
    %v71 = vld [vmem:[%s3 + $0x18] sm:$0xff]
    %vm72 = vcmp.gt.f32.partialorder %v68, 0.5
    %vm73 = vcmp.gt.f32.partialorder %v69, 0.5
    %vm74 = vcmp.gt.f32.partialorder %v70, 0.5
    %vm75 = vcmp.gt.f32.partialorder %v71, 0.5
    %v76 = vld [vmem:[%s1] sm:$0xf]
    %v77 = vld [vmem:[%s1 + $0x4] sm:$0xf]
    %v78 = vld [vmem:[%s1 + $0x8] sm:$0xf]
    %v79 = vld [vmem:[%s1 + $0xc] sm:$0xf]
    %v80 = vld [vmem:[%s4] sm:$0xf]
    %v81 = vld [vmem:[%s4 + $0x4] sm:$0xf]
    %v82 = vld [vmem:[%s4 + $0x8] sm:$0xf]
    %v83 = vld [vmem:[%s4 + $0xc] sm:$0xf]
    %v84 = vld [vmem:[%s4 + $0x10] sm:$0xf]
    %v85 = vld [vmem:[%s4 + $0x14] sm:$0xf]
    %v86 = vld [vmem:[%s4 + $0x18] sm:$0xf]
    %v87 = vld [vmem:[%s4 + $0x1c] sm:$0xf]
    %v88 = vld [vmem:[%s4 + $0x20] sm:$0xf]
    %v89 = vld [vmem:[%s4 + $0x24] sm:$0xf]
    %v90 = vld [vmem:[%s4 + $0x28] sm:$0xf]
    %v91 = vld [vmem:[%s4 + $0x2c] sm:$0xf]
    %v92 = vld [vmem:[%s4 + $0x30] sm:$0xf]
    %v93 = vld [vmem:[%s4 + $0x34] sm:$0xf]
    %v94 = vld [vmem:[%s4 + $0x38] sm:$0xf]
    %v95 = vld [vmem:[%s4 + $0x3c] sm:$0xf]
    %v96 = vld [vmem:[%s5] sm:$0x1]
    %v97 = vld [vmem:[%s6] sm:$0xf]
    %v98 = vld [vmem:[%s6 + $0x4] sm:$0xf]
    %v99 = vld [vmem:[%s6 + $0x8] sm:$0xf]
    %v100 = vld [vmem:[%s6 + $0xc] sm:$0xf]
    %v101 = vld [vmem:[%s6 + $0x10] sm:$0xf]
    %v102 = vld [vmem:[%s6 + $0x14] sm:$0xf]
    %v103 = vld [vmem:[%s6 + $0x18] sm:$0xf]
    %v104 = vld [vmem:[%s6 + $0x1c] sm:$0xf]
    %v105 = vld [vmem:[%s6 + $0x20] sm:$0xf]
    %v106 = vld [vmem:[%s6 + $0x24] sm:$0xf]
    %v107 = vld [vmem:[%s6 + $0x28] sm:$0xf]
    %v108 = vld [vmem:[%s6 + $0x2c] sm:$0xf]
    %v109 = vld [vmem:[%s6 + $0x30] sm:$0xf]
    %v110 = vld [vmem:[%s6 + $0x34] sm:$0xf]
    %v111 = vld [vmem:[%s6 + $0x38] sm:$0xf]
    %v112 = vld [vmem:[%s6 + $0x3c] sm:$0xf]
    %v113 = vld [vmem:[%s7] sm:$0x1]
    %v115 = vlaneseq
    %v116 = vshrl.u32 %v115, 7
    %v117 = vsub.s32 0, %v116
    %v118 = vrot.slane %v96, %v117
    %v124 = vunpack.c.l.b16 %v76
    %v125 = vunpack.c.l.b16 %v77
    %v126 = vunpack.c.l.b16 %v78
    %v127 = vunpack.c.l.b16 %v79
    %v128 = vpack.c.b16 %v125, %v124
    %v129 = vpack.c.b16 %v127, %v126
    %v148 = vunpack.c.l.b16 %v80
    %v149 = vunpack.c.l.b16 %v81
    %v150 = vunpack.c.l.b16 %v82
    %v151 = vunpack.c.l.b16 %v83
    %v152 = vunpack.c.l.b16 %v84
    %v153 = vunpack.c.l.b16 %v85
    %v154 = vunpack.c.l.b16 %v86
    %v155 = vunpack.c.l.b16 %v87
    %v156 = vunpack.c.l.b16 %v88
    %v157 = vunpack.c.l.b16 %v89
    %v158 = vunpack.c.l.b16 %v90
    %v159 = vunpack.c.l.b16 %v91
    %v160 = vunpack.c.l.b16 %v92
    %v161 = vunpack.c.l.b16 %v93
    %v162 = vunpack.c.l.b16 %v94
    %v163 = vunpack.c.l.b16 %v95
    %v164 = vpack.c.b16 %v149, %v148
    %v165 = vpack.c.b16 %v151, %v150
    %v166 = vpack.c.b16 %v153, %v152
    %v167 = vpack.c.b16 %v155, %v154
    %v168 = vpack.c.b16 %v157, %v156
    %v169 = vpack.c.b16 %v159, %v158
    %v170 = vpack.c.b16 %v161, %v160
    %v171 = vpack.c.b16 %v163, %v162
    %180 = vmatprep.subr.bf16.mxu0 0
    %181 = vmatpush1.bf16.msra.mxu0 %v164
    %182 = vmatprep.subr.bf16.mxu0 0
    %183 = vmatpush1.bf16.msra.mxu0 %v165
    %184 = vmatprep.subr.bf16.mxu0 0
    %185 = vmatpush1.bf16.msra.mxu0 %v166
    %186 = vmatprep.subr.bf16.mxu0 0
    %187 = vmatpush1.bf16.msra.mxu0 %v167
    %188 = vmatprep.subr.bf16.mxu0 0
    %189 = vmatpush1.bf16.msra.mxu0 %v168
    %190 = vmatprep.subr.bf16.mxu0 0
    %191 = vmatpush1.bf16.msra.mxu0 %v169
    %192 = vmatprep.subr.bf16.mxu0 0
    %193 = vmatpush1.bf16.msra.mxu0 %v170
    %194 = vmatprep.subr.bf16.mxu0 0
    %195 = vmatpush1.bf16.msra.mxu0 %v171
    %196 = vmatprep.subr.bf16.mxu0 0
    %197 = vmatpush1.bf16.msra.mxu0 0
    %198 = vmatprep.subr.bf16.mxu0 0
    %199 = vmatpush1.bf16.msra.mxu0 0
    %200 = vmatprep.subr.bf16.mxu0 0
    %201 = vmatpush1.bf16.msra.mxu0 0
    %202 = vmatprep.subr.bf16.mxu0 0
    %203 = vmatpush1.bf16.msra.mxu0 0
    %204 = vmatprep.subr.bf16.mxu0 0
    %205 = vmatpush1.bf16.msra.mxu0 0
    %206 = vmatprep.subr.bf16.mxu0 0
    %207 = vmatpush1.bf16.msra.mxu0 0
    %208 = vmatprep.subr.bf16.mxu0 0
    %209 = vmatpush1.bf16.msra.mxu0 0
    %210 = vmatprep.subr.bf16.mxu0 0
    %211 = vmatpush1.bf16.msra.mxu0 0
    %212 = vmatprep.mubr.bf16.mxu0 0
    %213 = vmatmul.mubr.bf16.gmra.mrb[0].mxu0 %v128
    %v214 = vpop.f32.mrb[0].mxu0
    %v215 = vadd.f32 %v118, %v214
    %v216 = vpop.f32.mrb[0].mxu0
    %v217 = vpop.f32.mrb[0].mxu0
    %v218 = vadd.f32 %v118, %v217
    %v219 = vpop.f32.mrb[0].mxu0
    %220 = vmatprep.mubr.bf16.mxu0 0
    %221 = vmatmul.mubr.bf16.gmra.mrb[0].mxu0 %v129
    %v222 = vpop.f32.mrb[0].mxu0
    %v223 = vadd.f32 %v118, %v222
    %v224 = vpop.f32.mrb[0].mxu0
    %v225 = vpop.f32.mrb[0].mxu0
    %v226 = vadd.f32 %v118, %v225
    %v227 = vpop.f32.mrb[0].mxu0
    %228 = vdwg.mxu0
    %v229 = vmax.f32 %v215, 0.0
    %v230 = vmax.f32 %v218, 0.0
    %v231 = vmax.f32 %v223, 0.0
    %v232 = vmax.f32 %v226, 0.0
    %v233 = vpack.c.bf16 %v230, %v229
    %v234 = vpack.c.bf16 %v232, %v231
    %v236 = vlaneseq
    %v237 = vshrl.u32 %v236, 7
    %v238 = vsub.s32 0, %v237
    %v239 = vrot.slane %v113, %v238
    %v257 = vunpack.c.l.b16 %v97
    %v258 = vunpack.c.l.b16 %v98
    %v259 = vunpack.c.l.b16 %v99
    %v260 = vunpack.c.l.b16 %v100
    %v261 = vunpack.c.l.b16 %v101
    %v262 = vunpack.c.l.b16 %v102
    %v263 = vunpack.c.l.b16 %v103
    %v264 = vunpack.c.l.b16 %v104
    %v265 = vunpack.c.l.b16 %v105
    %v266 = vunpack.c.l.b16 %v106
    %v267 = vunpack.c.l.b16 %v107
    %v268 = vunpack.c.l.b16 %v108
    %v269 = vunpack.c.l.b16 %v109
    %v270 = vunpack.c.l.b16 %v110
    %v271 = vunpack.c.l.b16 %v111
    %v272 = vunpack.c.l.b16 %v112
    %v273 = vpack.c.b16 %v258, %v257
    %v274 = vpack.c.b16 %v260, %v259
    %v275 = vpack.c.b16 %v262, %v261
    %v276 = vpack.c.b16 %v264, %v263
    %v277 = vpack.c.b16 %v266, %v265
    %v278 = vpack.c.b16 %v268, %v267
    %v279 = vpack.c.b16 %v270, %v269
    %v280 = vpack.c.b16 %v272, %v271
    %289 = vmatprep.subr.bf16.mxu0 0
    %290 = vmatpush1.bf16.msra.mxu0 %v273
    %291 = vmatprep.subr.bf16.mxu0 0
    %292 = vmatpush1.bf16.msra.mxu0 %v274
    %293 = vmatprep.subr.bf16.mxu0 0
    %294 = vmatpush1.bf16.msra.mxu0 %v275
    %295 = vmatprep.subr.bf16.mxu0 0
    %296 = vmatpush1.bf16.msra.mxu0 %v276
    %297 = vmatprep.subr.bf16.mxu0 0
    %298 = vmatpush1.bf16.msra.mxu0 %v277
    %299 = vmatprep.subr.bf16.mxu0 0
    %300 = vmatpush1.bf16.msra.mxu0 %v278
    %301 = vmatprep.subr.bf16.mxu0 0
    %302 = vmatpush1.bf16.msra.mxu0 %v279
    %303 = vmatprep.subr.bf16.mxu0 0
    %304 = vmatpush1.bf16.msra.mxu0 %v280
    %305 = vmatprep.subr.bf16.mxu0 0
    %306 = vmatpush1.bf16.msra.mxu0 0
    %307 = vmatprep.subr.bf16.mxu0 0
    %308 = vmatpush1.bf16.msra.mxu0 0
    %309 = vmatprep.subr.bf16.mxu0 0
    %310 = vmatpush1.bf16.msra.mxu0 0
    %311 = vmatprep.subr.bf16.mxu0 0
    %312 = vmatpush1.bf16.msra.mxu0 0
    %313 = vmatprep.subr.bf16.mxu0 0
    %314 = vmatpush1.bf16.msra.mxu0 0
    %315 = vmatprep.subr.bf16.mxu0 0
    %316 = vmatpush1.bf16.msra.mxu0 0
    %317 = vmatprep.subr.bf16.mxu0 0
    %318 = vmatpush1.bf16.msra.mxu0 0
    %319 = vmatprep.subr.bf16.mxu0 0
    %320 = vmatpush1.bf16.msra.mxu0 0
    %321 = vmatprep.mubr.bf16.mxu0 0
    %322 = vmatmul.mubr.bf16.gmra.mrb[0].mxu0 %v233
    %v323 = vpop.f32.mrb[0].mxu0
    %v324 = vadd.f32 %v239, %v323
    %v325 = vpop.f32.mrb[0].mxu0
    %v326 = vpop.f32.mrb[0].mxu0
    %v327 = vadd.f32 %v239, %v326
    %v328 = vpop.f32.mrb[0].mxu0
    %329 = vmatprep.mubr.bf16.mxu0 0
    %330 = vmatmul.mubr.bf16.gmra.mrb[0].mxu0 %v234
    %v331 = vpop.f32.mrb[0].mxu0
    %v332 = vadd.f32 %v239, %v331
    %v333 = vpop.f32.mrb[0].mxu0
    %v334 = vpop.f32.mrb[0].mxu0
    %v335 = vadd.f32 %v239, %v334
    %v336 = vpop.f32.mrb[0].mxu0
    %337 = vdwg.mxu0
    %v338 = vmax.f32 %v324, 0.0
    %v339 = vmax.f32 %v327, 0.0
    %v340 = vmax.f32 %v332, 0.0
    %v341 = vmax.f32 %v335, 0.0
    %v342 = vpack.c.bf16 %v339, %v338
    %v343 = vpack.c.bf16 %v341, %v340
    %v344 = vld [vmem:[%s8] sm:$0xf]
    %v345 = vld [vmem:[%s8 + $0x4] sm:$0xf]
    %v346 = vld [vmem:[%s8 + $0x8] sm:$0xf]
    %v347 = vld [vmem:[%s8 + $0xc] sm:$0xf]
    %v348 = vld [vmem:[%s8 + $0x10] sm:$0xf]
    %v349 = vld [vmem:[%s8 + $0x14] sm:$0xf]
    %v350 = vld [vmem:[%s8 + $0x18] sm:$0xf]
    %v351 = vld [vmem:[%s8 + $0x1c] sm:$0xf]
    %v352 = vld [vmem:[%s8 + $0x20] sm:$0xf]
    %v353 = vld [vmem:[%s8 + $0x24] sm:$0xf]
    %v354 = vld [vmem:[%s8 + $0x28] sm:$0xf]
    %v355 = vld [vmem:[%s8 + $0x2c] sm:$0xf]
    %v356 = vld [vmem:[%s8 + $0x30] sm:$0xf]
    %v357 = vld [vmem:[%s8 + $0x34] sm:$0xf]
    %v358 = vld [vmem:[%s8 + $0x38] sm:$0xf]
    %v359 = vld [vmem:[%s8 + $0x3c] sm:$0xf]
    %v360 = vld [vmem:[%s9] sm:$0x1]
    %v362 = vlaneseq
    %v363 = vshrl.u32 %v362, 7
    %v364 = vsub.s32 0, %v363
    %v365 = vrot.slane %v360, %v364
    %v383 = vunpack.c.l.b16 %v344
    %v384 = vunpack.c.l.b16 %v345
    %v385 = vunpack.c.l.b16 %v346
    %v386 = vunpack.c.l.b16 %v347
    %v387 = vunpack.c.l.b16 %v348
    %v388 = vunpack.c.l.b16 %v349
    %v389 = vunpack.c.l.b16 %v350
    %v390 = vunpack.c.l.b16 %v351
    %v391 = vunpack.c.l.b16 %v352
    %v392 = vunpack.c.l.b16 %v353
    %v393 = vunpack.c.l.b16 %v354
    %v394 = vunpack.c.l.b16 %v355
    %v395 = vunpack.c.l.b16 %v356
    %v396 = vunpack.c.l.b16 %v357
    %v397 = vunpack.c.l.b16 %v358
    %v398 = vunpack.c.l.b16 %v359
    %v399 = vpack.c.b16 %v384, %v383
    %v400 = vpack.c.b16 %v386, %v385
    %v401 = vpack.c.b16 %v388, %v387
    %v402 = vpack.c.b16 %v390, %v389
    %v403 = vpack.c.b16 %v392, %v391
    %v404 = vpack.c.b16 %v394, %v393
    %v405 = vpack.c.b16 %v396, %v395
    %v406 = vpack.c.b16 %v398, %v397
    %415 = vmatprep.subr.bf16.mxu0 0
    %416 = vmatpush1.bf16.msra.mxu0 %v399
    %417 = vmatprep.subr.bf16.mxu0 0
    %418 = vmatpush1.bf16.msra.mxu0 %v400
    %419 = vmatprep.subr.bf16.mxu0 0
    %420 = vmatpush1.bf16.msra.mxu0 %v401
    %421 = vmatprep.subr.bf16.mxu0 0
    %422 = vmatpush1.bf16.msra.mxu0 %v402
    %423 = vmatprep.subr.bf16.mxu0 0
    %424 = vmatpush1.bf16.msra.mxu0 %v403
    %425 = vmatprep.subr.bf16.mxu0 0
    %426 = vmatpush1.bf16.msra.mxu0 %v404
    %427 = vmatprep.subr.bf16.mxu0 0
    %428 = vmatpush1.bf16.msra.mxu0 %v405
    %429 = vmatprep.subr.bf16.mxu0 0
    %430 = vmatpush1.bf16.msra.mxu0 %v406
    %431 = vmatprep.subr.bf16.mxu0 0
    %432 = vmatpush1.bf16.msra.mxu0 0
    %433 = vmatprep.subr.bf16.mxu0 0
    %434 = vmatpush1.bf16.msra.mxu0 0
    %435 = vmatprep.subr.bf16.mxu0 0
    %436 = vmatpush1.bf16.msra.mxu0 0
    %437 = vmatprep.subr.bf16.mxu0 0
    %438 = vmatpush1.bf16.msra.mxu0 0
    %439 = vmatprep.subr.bf16.mxu0 0
    %440 = vmatpush1.bf16.msra.mxu0 0
    %441 = vmatprep.subr.bf16.mxu0 0
    %442 = vmatpush1.bf16.msra.mxu0 0
    %443 = vmatprep.subr.bf16.mxu0 0
    %444 = vmatpush1.bf16.msra.mxu0 0
    %445 = vmatprep.subr.bf16.mxu0 0
    %446 = vmatpush1.bf16.msra.mxu0 0
    %447 = vmatprep.mubr.bf16.mxu0 0
    %448 = vmatmul.mubr.bf16.gmra.mrb[0].mxu0 %v342
    %v449 = vpop.f32.mrb[0].mxu0
    %v450 = vadd.f32 %v365, %v449
    %v451 = vpop.f32.mrb[0].mxu0
    %v452 = vpop.f32.mrb[0].mxu0
    %v453 = vadd.f32 %v365, %v452
    %v454 = vpop.f32.mrb[0].mxu0
    %455 = vmatprep.mubr.bf16.mxu0 0
    %456 = vmatmul.mubr.bf16.gmra.mrb[0].mxu0 %v343
    %v457 = vpop.f32.mrb[0].mxu0
    %v458 = vadd.f32 %v365, %v457
    %v459 = vpop.f32.mrb[0].mxu0
    %v460 = vpop.f32.mrb[0].mxu0
    %v461 = vadd.f32 %v365, %v460
    %v462 = vpop.f32.mrb[0].mxu0
    %463 = vdwg.mxu0
    %v464 = vsel %vm72, 1, 0
    %v465 = vsel %vm73, 1, 0
    %v466 = vsel %vm74, 1, 0
    %v467 = vsel %vm75, 1, 0
    %468 = vset.pattern.permute.xlu0 0
    %469 = vperm.xlu0 %468, %v464
    %v470 = vpop.permute.xlu0 %469
    %471 = vset.pattern.permute.xlu0 0
    %472 = vperm.xlu0 %471, %v465
    %v473 = vpop.permute.xlu0 %472
    %474 = vset.pattern.permute.xlu0 0
    %475 = vperm.xlu0 %474, %v466
    %v476 = vpop.permute.xlu0 %475
    %477 = vset.pattern.permute.xlu0 0
    %478 = vperm.xlu0 %477, %v467
    %v479 = vpop.permute.xlu0 %478
    %vm480 = vcmp.eq.s32.totalorder %v470, 1
    %vm481 = vcmp.eq.s32.totalorder %v473, 1
    %vm482 = vcmp.eq.s32.totalorder %v476, 1
    %vm483 = vcmp.eq.s32.totalorder %v479, 1
    %v484 = vsel %vm480, %v450, -1e+30
    %v485 = vsel %vm481, %v453, -1e+30
    %v486 = vsel %vm482, %v458, -1e+30
    %v487 = vsel %vm483, %v461, -1e+30
    %v488 = vmax.f32 %v484, %v485
    %v489 = vmax.f32 %v486, %v487
    %v490 = vmax.f32 %v488, %v489
    %v491 = vrot.slane %v490, 4
    %v492 = vmax.f32 %v490, %v491
    %v493 = vrot.slane %v492, 2
    %v494 = vmax.f32 %v492, %v493
    %v495 = vrot.slane %v494, 1
    %v496 = vmax.f32 %v494, %v495
    %497 = vset.pattern.permute.xlu0 1
    %498 = vperm.xlu0 %497, %v464
    %v499 = vpop.permute.xlu0 %498
    %500 = vset.pattern.permute.xlu0 1
    %501 = vperm.xlu0 %500, %v465
    %v502 = vpop.permute.xlu0 %501
    %503 = vset.pattern.permute.xlu0 1
    %504 = vperm.xlu0 %503, %v466
    %v505 = vpop.permute.xlu0 %504
    %506 = vset.pattern.permute.xlu0 1
    %507 = vperm.xlu0 %506, %v467
    %v508 = vpop.permute.xlu0 %507
    %vm509 = vcmp.eq.s32.totalorder %v499, 1
    %vm510 = vcmp.eq.s32.totalorder %v502, 1
    %vm511 = vcmp.eq.s32.totalorder %v505, 1
    %vm512 = vcmp.eq.s32.totalorder %v508, 1
    %v513 = vsel %vm509, %v450, -1e+30
    %v514 = vsel %vm510, %v453, -1e+30
    %v515 = vsel %vm511, %v458, -1e+30
    %v516 = vsel %vm512, %v461, -1e+30
    %v517 = vmax.f32 %v513, %v514
    %v518 = vmax.f32 %v515, %v516
    %v519 = vmax.f32 %v517, %v518
    %v520 = vrot.slane %v519, 4
    %v521 = vmax.f32 %v519, %v520
    %v522 = vrot.slane %v521, 2
    %v523 = vmax.f32 %v521, %v522
    %v524 = vrot.slane %v523, 1
    %v525 = vmax.f32 %v523, %v524
    %vm526 = vcmask 1040384
    %v527 = vsel %vm526, %v496, %v525
    %v528 = vld [vmem:[%s2] sm:$0xf]
    %v529 = vld [vmem:[%s2 + $0x4] sm:$0xf]
    %v530 = vld [vmem:[%s2 + $0x8] sm:$0xf]
    %v531 = vld [vmem:[%s2 + $0xc] sm:$0xf]
    %532 = vst [vmem:[#allocation2 + $0x30] sm:$0xff] 0
    %533 = vst [vmem:[#allocation2 + $0x38] sm:$0xff] 0
    %s534 = sld [smem:[#allocation3]]
    %v535 = vstv %s534
    %v536 = vmul.f32 %v535, %v338
    %v537 = vmul.f32 %v535, %v339
    %v538 = vmul.f32 %v535, %v340
    %v539 = vmul.f32 %v535, %v341
    %v540 = vpack.c.bf16 %v537, %v536
    %v541 = vpack.c.bf16 %v539, %v538
    %542 = vst [vmem:[#allocation2] sm:$0xff] %v540
    %543 = vst [vmem:[#allocation2 + $0x8] sm:$0xff] %v541
    %s544 = sld [smem:[#allocation3 + $0x1]]
    %v545 = vstv %s544
    %v546 = vmul.f32 %v545, %v338
    %v547 = vmul.f32 %v545, %v339
    %v548 = vmul.f32 %v545, %v340
    %v549 = vmul.f32 %v545, %v341
    %v550 = vpack.c.bf16 %v547, %v546
    %v551 = vpack.c.bf16 %v549, %v548
    %552 = vst [vmem:[#allocation2 + $0x10] sm:$0xff] %v550
    %553 = vst [vmem:[#allocation2 + $0x18] sm:$0xff] %v551
    %s554 = sld [smem:[#allocation3 + $0x2]]
    %v555 = vstv %s554
    %v556 = vmul.f32 %v555, %v338
    %v557 = vmul.f32 %v555, %v339
    %v558 = vmul.f32 %v555, %v340
    %v559 = vmul.f32 %v555, %v341
    %v560 = vpack.c.bf16 %v557, %v556
    %v561 = vpack.c.bf16 %v559, %v558
    %562 = vst [vmem:[#allocation2 + $0x20] sm:$0xff] %v560
    %563 = vst [vmem:[#allocation2 + $0x28] sm:$0xff] %v561
    %v564 = vld [vmem:[#allocation2] sm:$0xff]
    %v565 = vld [vmem:[#allocation2 + $0x8] sm:$0xff]
    %v566 = vld [vmem:[#allocation2 + $0x10] sm:$0xff]
    %v567 = vld [vmem:[#allocation2 + $0x18] sm:$0xff]
    %v568 = vld [vmem:[#allocation2 + $0x20] sm:$0xff]
    %v569 = vld [vmem:[#allocation2 + $0x28] sm:$0xff]
    %v570 = vld [vmem:[#allocation2 + $0x30] sm:$0xff]
    %v571 = vld [vmem:[#allocation2 + $0x38] sm:$0xff]
    %v576 = vunpack.c.l.b16 %v528
    %v577 = vunpack.c.l.b16 %v529
    %v578 = vunpack.c.l.b16 %v530
    %v579 = vunpack.c.l.b16 %v531
    %v580 = vpack.c.b16 %v577, %v576
    %v581 = vpack.c.b16 %v579, %v578
    %584 = vmatprep.subr.bf16.mxu0 0
    %585 = vmatpush1.bf16.msra.mxu0 %v564
    %586 = vmatprep.subr.bf16.mxu0 0
    %587 = vmatpush1.bf16.msra.mxu0 %v565
    %588 = vmatprep.subr.bf16.mxu0 0
    %589 = vmatpush1.bf16.msra.mxu0 %v566
    %590 = vmatprep.subr.bf16.mxu0 0
    %591 = vmatpush1.bf16.msra.mxu0 %v567
    %592 = vmatprep.subr.bf16.mxu0 0
    %593 = vmatpush1.bf16.msra.mxu0 %v568
    %594 = vmatprep.subr.bf16.mxu0 0
    %595 = vmatpush1.bf16.msra.mxu0 %v569
    %596 = vmatprep.subr.bf16.mxu0 0
    %597 = vmatpush1.bf16.msra.mxu0 %v570
    %598 = vmatprep.subr.bf16.mxu0 0
    %599 = vmatpush1.bf16.msra.mxu0 %v571
    %600 = vmatprep.subr.bf16.mxu0 0
    %601 = vmatpush1.bf16.msra.mxu0 0
    %602 = vmatprep.subr.bf16.mxu0 0
    %603 = vmatpush1.bf16.msra.mxu0 0
    %604 = vmatprep.subr.bf16.mxu0 0
    %605 = vmatpush1.bf16.msra.mxu0 0
    %606 = vmatprep.subr.bf16.mxu0 0
    %607 = vmatpush1.bf16.msra.mxu0 0
    %608 = vmatprep.subr.bf16.mxu0 0
    %609 = vmatpush1.bf16.msra.mxu0 0
    %610 = vmatprep.subr.bf16.mxu0 0
    %611 = vmatpush1.bf16.msra.mxu0 0
    %612 = vmatprep.subr.bf16.mxu0 0
    %613 = vmatpush1.bf16.msra.mxu0 0
    %614 = vmatprep.subr.bf16.mxu0 0
    %615 = vmatpush1.bf16.msra.mxu0 0
    %616 = vmatprep.mubr.bf16.mxu0 0
    %617 = vmatmul.mubr.bf16.gmra.mrb[0].mxu0 %v580
    %v618 = vpop.f32.mrb[0].mxu0
    %v619 = vadd.f32 0.0, %v618
    %v620 = vpop.f32.mrb[0].mxu0
    %v621 = vpop.f32.mrb[0].mxu0
    %v622 = vadd.f32 0.0, %v621
    %v623 = vpop.f32.mrb[0].mxu0
    %624 = vmatprep.mubr.bf16.mxu0 0
    %625 = vmatmul.mubr.bf16.gmra.mrb[0].mxu0 %v581
    %v626 = vpop.f32.mrb[0].mxu0
    %v627 = vadd.f32 0.0, %v626
    %v628 = vpop.f32.mrb[0].mxu0
    %v629 = vpop.f32.mrb[0].mxu0
    %v630 = vadd.f32 0.0, %v629
    %v631 = vpop.f32.mrb[0].mxu0
    %632 = vdwg.mxu0
    %v633 = vadd.f32 %v338, %v619
    %v634 = vadd.f32 %v339, %v622
    %v635 = vadd.f32 %v340, %v627
    %v636 = vadd.f32 %v341, %v630
    %v637 = vld [vmem:[%s10] sm:$0xf]
    %v638 = vld [vmem:[%s10 + $0x4] sm:$0xf]
    %v639 = vld [vmem:[%s10 + $0x8] sm:$0xf]
    %v640 = vld [vmem:[%s10 + $0xc] sm:$0xf]
    %v641 = vld [vmem:[%s10 + $0x10] sm:$0xf]
    %v642 = vld [vmem:[%s10 + $0x14] sm:$0xf]
    %v643 = vld [vmem:[%s10 + $0x18] sm:$0xf]
    %v644 = vld [vmem:[%s10 + $0x1c] sm:$0xf]
    %v645 = vld [vmem:[%s10 + $0x20] sm:$0xf]
    %v646 = vld [vmem:[%s10 + $0x24] sm:$0xf]
    %v647 = vld [vmem:[%s10 + $0x28] sm:$0xf]
    %v648 = vld [vmem:[%s10 + $0x2c] sm:$0xf]
    %v649 = vld [vmem:[%s10 + $0x30] sm:$0xf]
    %v650 = vld [vmem:[%s10 + $0x34] sm:$0xf]
    %v651 = vld [vmem:[%s10 + $0x38] sm:$0xf]
    %v652 = vld [vmem:[%s10 + $0x3c] sm:$0xf]
    %v653 = vld [vmem:[%s11] sm:$0x1]
    %v654 = vld [vmem:[%s12] sm:$0xf]
    %v655 = vld [vmem:[%s12 + $0x4] sm:$0xf]
    %v656 = vld [vmem:[%s12 + $0x8] sm:$0xf]
    %v657 = vld [vmem:[%s12 + $0xc] sm:$0xf]
    %v658 = vld [vmem:[%s12 + $0x10] sm:$0xf]
    %v659 = vld [vmem:[%s12 + $0x14] sm:$0xf]
    %v660 = vld [vmem:[%s12 + $0x18] sm:$0xf]
    %v661 = vld [vmem:[%s12 + $0x1c] sm:$0xf]
    %v662 = vld [vmem:[%s12 + $0x20] sm:$0xf]
    %v663 = vld [vmem:[%s12 + $0x24] sm:$0xf]
    %v664 = vld [vmem:[%s12 + $0x28] sm:$0xf]
    %v665 = vld [vmem:[%s12 + $0x2c] sm:$0xf]
    %v666 = vld [vmem:[%s12 + $0x30] sm:$0xf]
    %v667 = vld [vmem:[%s12 + $0x34] sm:$0xf]
    %v668 = vld [vmem:[%s12 + $0x38] sm:$0xf]
    %v669 = vld [vmem:[%s12 + $0x3c] sm:$0xf]
    %v670 = vld [vmem:[%s13] sm:$0x1]
    %v671 = vpack.c.bf16 %v634, %v633
    %v672 = vpack.c.bf16 %v636, %v635
    %v674 = vlaneseq
    %v675 = vshrl.u32 %v674, 7
    %v676 = vsub.s32 0, %v675
    %v677 = vrot.slane %v653, %v676
    %v695 = vunpack.c.l.b16 %v637
    %v696 = vunpack.c.l.b16 %v638
    %v697 = vunpack.c.l.b16 %v639
    %v698 = vunpack.c.l.b16 %v640
    %v699 = vunpack.c.l.b16 %v641
    %v700 = vunpack.c.l.b16 %v642
    %v701 = vunpack.c.l.b16 %v643
    %v702 = vunpack.c.l.b16 %v644
    %v703 = vunpack.c.l.b16 %v645
    %v704 = vunpack.c.l.b16 %v646
    %v705 = vunpack.c.l.b16 %v647
    %v706 = vunpack.c.l.b16 %v648
    %v707 = vunpack.c.l.b16 %v649
    %v708 = vunpack.c.l.b16 %v650
    %v709 = vunpack.c.l.b16 %v651
    %v710 = vunpack.c.l.b16 %v652
    %v711 = vpack.c.b16 %v696, %v695
    %v712 = vpack.c.b16 %v698, %v697
    %v713 = vpack.c.b16 %v700, %v699
    %v714 = vpack.c.b16 %v702, %v701
    %v715 = vpack.c.b16 %v704, %v703
    %v716 = vpack.c.b16 %v706, %v705
    %v717 = vpack.c.b16 %v708, %v707
    %v718 = vpack.c.b16 %v710, %v709
    %727 = vmatprep.subr.bf16.mxu0 0
    %728 = vmatpush1.bf16.msra.mxu0 %v711
    %729 = vmatprep.subr.bf16.mxu0 0
    %730 = vmatpush1.bf16.msra.mxu0 %v712
    %731 = vmatprep.subr.bf16.mxu0 0
    %732 = vmatpush1.bf16.msra.mxu0 %v713
    %733 = vmatprep.subr.bf16.mxu0 0
    %734 = vmatpush1.bf16.msra.mxu0 %v714
    %735 = vmatprep.subr.bf16.mxu0 0
    %736 = vmatpush1.bf16.msra.mxu0 %v715
    %737 = vmatprep.subr.bf16.mxu0 0
    %738 = vmatpush1.bf16.msra.mxu0 %v716
    %739 = vmatprep.subr.bf16.mxu0 0
    %740 = vmatpush1.bf16.msra.mxu0 %v717
    %741 = vmatprep.subr.bf16.mxu0 0
    %742 = vmatpush1.bf16.msra.mxu0 %v718
    %743 = vmatprep.subr.bf16.mxu0 0
    %744 = vmatpush1.bf16.msra.mxu0 0
    %745 = vmatprep.subr.bf16.mxu0 0
    %746 = vmatpush1.bf16.msra.mxu0 0
    %747 = vmatprep.subr.bf16.mxu0 0
    %748 = vmatpush1.bf16.msra.mxu0 0
    %749 = vmatprep.subr.bf16.mxu0 0
    %750 = vmatpush1.bf16.msra.mxu0 0
    %751 = vmatprep.subr.bf16.mxu0 0
    %752 = vmatpush1.bf16.msra.mxu0 0
    %753 = vmatprep.subr.bf16.mxu0 0
    %754 = vmatpush1.bf16.msra.mxu0 0
    %755 = vmatprep.subr.bf16.mxu0 0
    %756 = vmatpush1.bf16.msra.mxu0 0
    %757 = vmatprep.subr.bf16.mxu0 0
    %758 = vmatpush1.bf16.msra.mxu0 0
    %759 = vmatprep.mubr.bf16.mxu0 0
    %760 = vmatmul.mubr.bf16.gmra.mrb[0].mxu0 %v671
    %v761 = vpop.f32.mrb[0].mxu0
    %v762 = vadd.f32 %v677, %v761
    %v763 = vpop.f32.mrb[0].mxu0
    %v764 = vpop.f32.mrb[0].mxu0
    %v765 = vadd.f32 %v677, %v764
    %v766 = vpop.f32.mrb[0].mxu0
    %767 = vmatprep.mubr.bf16.mxu0 0
    %768 = vmatmul.mubr.bf16.gmra.mrb[0].mxu0 %v672
    %v769 = vpop.f32.mrb[0].mxu0
    %v770 = vadd.f32 %v677, %v769
    %v771 = vpop.f32.mrb[0].mxu0
    %v772 = vpop.f32.mrb[0].mxu0
    %v773 = vadd.f32 %v677, %v772
    %v774 = vpop.f32.mrb[0].mxu0
    %775 = vdwg.mxu0
    %v776 = vmax.f32 %v762, 0.0
    %v777 = vmax.f32 %v765, 0.0
    %v778 = vmax.f32 %v770, 0.0
    %v779 = vmax.f32 %v773, 0.0
    %v780 = vpack.c.bf16 %v777, %v776
    %v781 = vpack.c.bf16 %v779, %v778
    %v783 = vlaneseq
    %v784 = vshrl.u32 %v783, 7
    %v785 = vsub.s32 0, %v784
    %v786 = vrot.slane %v670, %v785
    %v804 = vunpack.c.l.b16 %v654
    %v805 = vunpack.c.l.b16 %v655
    %v806 = vunpack.c.l.b16 %v656
    %v807 = vunpack.c.l.b16 %v657
    %v808 = vunpack.c.l.b16 %v658
    %v809 = vunpack.c.l.b16 %v659
    %v810 = vunpack.c.l.b16 %v660
    %v811 = vunpack.c.l.b16 %v661
    %v812 = vunpack.c.l.b16 %v662
    %v813 = vunpack.c.l.b16 %v663
    %v814 = vunpack.c.l.b16 %v664
    %v815 = vunpack.c.l.b16 %v665
    %v816 = vunpack.c.l.b16 %v666
    %v817 = vunpack.c.l.b16 %v667
    %v818 = vunpack.c.l.b16 %v668
    %v819 = vunpack.c.l.b16 %v669
    %v820 = vpack.c.b16 %v805, %v804
    %v821 = vpack.c.b16 %v807, %v806
    %v822 = vpack.c.b16 %v809, %v808
    %v823 = vpack.c.b16 %v811, %v810
    %v824 = vpack.c.b16 %v813, %v812
    %v825 = vpack.c.b16 %v815, %v814
    %v826 = vpack.c.b16 %v817, %v816
    %v827 = vpack.c.b16 %v819, %v818
    %836 = vmatprep.subr.bf16.mxu0 0
    %837 = vmatpush1.bf16.msra.mxu0 %v820
    %838 = vmatprep.subr.bf16.mxu0 0
    %839 = vmatpush1.bf16.msra.mxu0 %v821
    %840 = vmatprep.subr.bf16.mxu0 0
    %841 = vmatpush1.bf16.msra.mxu0 %v822
    %842 = vmatprep.subr.bf16.mxu0 0
    %843 = vmatpush1.bf16.msra.mxu0 %v823
    %844 = vmatprep.subr.bf16.mxu0 0
    %845 = vmatpush1.bf16.msra.mxu0 %v824
    %846 = vmatprep.subr.bf16.mxu0 0
    %847 = vmatpush1.bf16.msra.mxu0 %v825
    %848 = vmatprep.subr.bf16.mxu0 0
    %849 = vmatpush1.bf16.msra.mxu0 %v826
    %850 = vmatprep.subr.bf16.mxu0 0
    %851 = vmatpush1.bf16.msra.mxu0 %v827
    %852 = vmatprep.subr.bf16.mxu0 0
    %853 = vmatpush1.bf16.msra.mxu0 0
    %854 = vmatprep.subr.bf16.mxu0 0
    %855 = vmatpush1.bf16.msra.mxu0 0
    %856 = vmatprep.subr.bf16.mxu0 0
    %857 = vmatpush1.bf16.msra.mxu0 0
    %858 = vmatprep.subr.bf16.mxu0 0
    %859 = vmatpush1.bf16.msra.mxu0 0
    %860 = vmatprep.subr.bf16.mxu0 0
    %861 = vmatpush1.bf16.msra.mxu0 0
    %862 = vmatprep.subr.bf16.mxu0 0
    %863 = vmatpush1.bf16.msra.mxu0 0
    %864 = vmatprep.subr.bf16.mxu0 0
    %865 = vmatpush1.bf16.msra.mxu0 0
    %866 = vmatprep.subr.bf16.mxu0 0
    %867 = vmatpush1.bf16.msra.mxu0 0
    %868 = vmatprep.mubr.bf16.mxu0 0
    %869 = vmatmul.mubr.bf16.gmra.mrb[0].mxu0 %v780
    %v870 = vpop.f32.mrb[0].mxu0
    %v871 = vadd.f32 %v786, %v870
    %v872 = vpop.f32.mrb[0].mxu0
    %v873 = vpop.f32.mrb[0].mxu0
    %v874 = vadd.f32 %v786, %v873
    %v875 = vpop.f32.mrb[0].mxu0
    %876 = vmatprep.mubr.bf16.mxu0 0
    %877 = vmatmul.mubr.bf16.gmra.mrb[0].mxu0 %v781
    %v878 = vpop.f32.mrb[0].mxu0
    %v879 = vadd.f32 %v786, %v878
    %v880 = vpop.f32.mrb[0].mxu0
    %v881 = vpop.f32.mrb[0].mxu0
    %v882 = vadd.f32 %v786, %v881
    %v883 = vpop.f32.mrb[0].mxu0
    %884 = vdwg.mxu0
    %v885 = vmax.f32 %v871, 0.0
    %v886 = vmax.f32 %v874, 0.0
    %v887 = vmax.f32 %v879, 0.0
    %v888 = vmax.f32 %v882, 0.0
    %v889 = vsel %vm480, %v885, -1e+30
    %v890 = vsel %vm481, %v886, -1e+30
    %v891 = vsel %vm482, %v887, -1e+30
    %v892 = vsel %vm483, %v888, -1e+30
    %v893 = vmax.f32 %v889, %v890
    %v894 = vmax.f32 %v891, %v892
    %v895 = vmax.f32 %v893, %v894
    %v896 = vrot.slane %v895, 4
    %v897 = vmax.f32 %v895, %v896
    %v898 = vrot.slane %v897, 2
    %v899 = vmax.f32 %v897, %v898
    %v900 = vrot.slane %v899, 1
    %v901 = vmax.f32 %v899, %v900
    %v902 = vsel %vm509, %v885, -1e+30
    %v903 = vsel %vm510, %v886, -1e+30
    %v904 = vsel %vm511, %v887, -1e+30
    %v905 = vsel %vm512, %v888, -1e+30
    %v906 = vmax.f32 %v902, %v903
    %v907 = vmax.f32 %v904, %v905
    %v908 = vmax.f32 %v906, %v907
    %v909 = vrot.slane %v908, 4
    %v910 = vmax.f32 %v908, %v909
    %v911 = vrot.slane %v910, 2
    %v912 = vmax.f32 %v910, %v911
    %v913 = vrot.slane %v912, 1
    %v914 = vmax.f32 %v912, %v913
    %v915 = vsel %vm526, %v901, %v914
    %v916 = vpack.c.bf16 %v915, %v915
    %v917 = vld [vmem:[%s14] sm:$0xf]
    %v918 = vld [vmem:[%s14 + $0x4] sm:$0xf]
    %v919 = vld [vmem:[%s14 + $0x8] sm:$0xf]
    %v920 = vld [vmem:[%s14 + $0xc] sm:$0xf]
    %v921 = vld [vmem:[%s14 + $0x10] sm:$0xf]
    %v922 = vld [vmem:[%s14 + $0x14] sm:$0xf]
    %v923 = vld [vmem:[%s14 + $0x18] sm:$0xf]
    %v924 = vld [vmem:[%s14 + $0x1c] sm:$0xf]
    %v925 = vld [vmem:[%s14 + $0x20] sm:$0xf]
    %v926 = vld [vmem:[%s14 + $0x24] sm:$0xf]
    %v927 = vld [vmem:[%s14 + $0x28] sm:$0xf]
    %v928 = vld [vmem:[%s14 + $0x2c] sm:$0xf]
    %v929 = vld [vmem:[%s14 + $0x30] sm:$0xf]
    %v930 = vld [vmem:[%s14 + $0x34] sm:$0xf]
    %v931 = vld [vmem:[%s14 + $0x38] sm:$0xf]
    %v932 = vld [vmem:[%s14 + $0x3c] sm:$0xf]
    %v933 = vld [vmem:[%s15] sm:$0x1]
    %v935 = vlaneseq
    %v936 = vshrl.u32 %v935, 7
    %v937 = vsub.s32 0, %v936
    %v938 = vrot.slane %v933, %v937
    %v956 = vunpack.c.l.b16 %v917
    %v957 = vunpack.c.l.b16 %v918
    %v958 = vunpack.c.l.b16 %v919
    %v959 = vunpack.c.l.b16 %v920
    %v960 = vunpack.c.l.b16 %v921
    %v961 = vunpack.c.l.b16 %v922
    %v962 = vunpack.c.l.b16 %v923
    %v963 = vunpack.c.l.b16 %v924
    %v964 = vunpack.c.l.b16 %v925
    %v965 = vunpack.c.l.b16 %v926
    %v966 = vunpack.c.l.b16 %v927
    %v967 = vunpack.c.l.b16 %v928
    %v968 = vunpack.c.l.b16 %v929
    %v969 = vunpack.c.l.b16 %v930
    %v970 = vunpack.c.l.b16 %v931
    %v971 = vunpack.c.l.b16 %v932
    %v972 = vpack.c.b16 %v957, %v956
    %v973 = vpack.c.b16 %v959, %v958
    %v974 = vpack.c.b16 %v961, %v960
    %v975 = vpack.c.b16 %v963, %v962
    %v976 = vpack.c.b16 %v965, %v964
    %v977 = vpack.c.b16 %v967, %v966
    %v978 = vpack.c.b16 %v969, %v968
    %v979 = vpack.c.b16 %v971, %v970
    %988 = vmatprep.subr.bf16.mxu0 0
    %989 = vmatpush1.bf16.msra.mxu0 %v972
    %990 = vmatprep.subr.bf16.mxu0 0
    %991 = vmatpush1.bf16.msra.mxu0 %v973
    %992 = vmatprep.subr.bf16.mxu0 0
    %993 = vmatpush1.bf16.msra.mxu0 %v974
    %994 = vmatprep.subr.bf16.mxu0 0
    %995 = vmatpush1.bf16.msra.mxu0 %v975
    %996 = vmatprep.subr.bf16.mxu0 0
    %997 = vmatpush1.bf16.msra.mxu0 %v976
    %998 = vmatprep.subr.bf16.mxu0 0
    %999 = vmatpush1.bf16.msra.mxu0 %v977
    %1000 = vmatprep.subr.bf16.mxu0 0
    %1001 = vmatpush1.bf16.msra.mxu0 %v978
    %1002 = vmatprep.subr.bf16.mxu0 0
    %1003 = vmatpush1.bf16.msra.mxu0 %v979
    %1004 = vmatprep.subr.bf16.mxu0 0
    %1005 = vmatpush1.bf16.msra.mxu0 0
    %1006 = vmatprep.subr.bf16.mxu0 0
    %1007 = vmatpush1.bf16.msra.mxu0 0
    %1008 = vmatprep.subr.bf16.mxu0 0
    %1009 = vmatpush1.bf16.msra.mxu0 0
    %1010 = vmatprep.subr.bf16.mxu0 0
    %1011 = vmatpush1.bf16.msra.mxu0 0
    %1012 = vmatprep.subr.bf16.mxu0 0
    %1013 = vmatpush1.bf16.msra.mxu0 0
    %1014 = vmatprep.subr.bf16.mxu0 0
    %1015 = vmatpush1.bf16.msra.mxu0 0
    %1016 = vmatprep.subr.bf16.mxu0 0
    %1017 = vmatpush1.bf16.msra.mxu0 0
    %1018 = vmatprep.subr.bf16.mxu0 0
    %1019 = vmatpush1.bf16.msra.mxu0 0
    %1020 = vmatprep.mubr.bf16.mxu0 0
    %1021 = vmatmul.mubr.bf16.gmra.mrb[0].mxu0 %v916
    %v1022 = vpop.f32.mrb[0].mxu0
    %v1023 = vadd.f32 %v938, %v1022
    %v1024 = vpop.f32.mrb[0].mxu0
    %v1025 = vpop.f32.mrb[0].mxu0
    %v1026 = vpop.f32.mrb[0].mxu0
    %1027 = vdwg.mxu0
    %v1028 = vadd.f32 %v527, %v1023
    %s1029 = sld [smem:[#allocation3 + $0x3]]
    %v1030 = vstv %s1029
    %v1031 = vmul.f32 %v1030, %v885
    %v1032 = vmul.f32 %v1030, %v886
    %v1033 = vmul.f32 %v1030, %v887
    %v1034 = vmul.f32 %v1030, %v888
    %v1035 = vpack.c.bf16 %v1032, %v1031
    %v1036 = vpack.c.bf16 %v1034, %v1033
    %1037 = vst [vmem:[#allocation2] sm:$0xff] %v1035
    %1038 = vst [vmem:[#allocation2 + $0x8] sm:$0xff] %v1036
    %s1039 = sld [smem:[#allocation3 + $0x4]]
    %v1040 = vstv %s1039
    %v1041 = vmul.f32 %v1040, %v885
    %v1042 = vmul.f32 %v1040, %v886
    %v1043 = vmul.f32 %v1040, %v887
    %v1044 = vmul.f32 %v1040, %v888
    %v1045 = vpack.c.bf16 %v1042, %v1041
    %v1046 = vpack.c.bf16 %v1044, %v1043
    %1047 = vst [vmem:[#allocation2 + $0x10] sm:$0xff] %v1045
    %1048 = vst [vmem:[#allocation2 + $0x18] sm:$0xff] %v1046
    %s1049 = sld [smem:[#allocation3 + $0x5]]
    %v1050 = vstv %s1049
    %v1051 = vmul.f32 %v1050, %v885
    %v1052 = vmul.f32 %v1050, %v886
    %v1053 = vmul.f32 %v1050, %v887
    %v1054 = vmul.f32 %v1050, %v888
    %v1055 = vpack.c.bf16 %v1052, %v1051
    %v1056 = vpack.c.bf16 %v1054, %v1053
    %1057 = vst [vmem:[#allocation2 + $0x20] sm:$0xff] %v1055
    %1058 = vst [vmem:[#allocation2 + $0x28] sm:$0xff] %v1056
    %v1059 = vld [vmem:[#allocation2] sm:$0xff]
    %v1060 = vld [vmem:[#allocation2 + $0x8] sm:$0xff]
    %v1061 = vld [vmem:[#allocation2 + $0x10] sm:$0xff]
    %v1062 = vld [vmem:[#allocation2 + $0x18] sm:$0xff]
    %v1063 = vld [vmem:[#allocation2 + $0x20] sm:$0xff]
    %v1064 = vld [vmem:[#allocation2 + $0x28] sm:$0xff]
    %v1065 = vld [vmem:[#allocation2 + $0x30] sm:$0xff]
    %v1066 = vld [vmem:[#allocation2 + $0x38] sm:$0xff]
    %1067 = vmatprep.subr.bf16.mxu0 0
    %1068 = vmatpush1.bf16.msra.mxu0 %v1059
    %1069 = vmatprep.subr.bf16.mxu0 0
    %1070 = vmatpush1.bf16.msra.mxu0 %v1060
    %1071 = vmatprep.subr.bf16.mxu0 0
    %1072 = vmatpush1.bf16.msra.mxu0 %v1061
    %1073 = vmatprep.subr.bf16.mxu0 0
    %1074 = vmatpush1.bf16.msra.mxu0 %v1062
    %1075 = vmatprep.subr.bf16.mxu0 0
    %1076 = vmatpush1.bf16.msra.mxu0 %v1063
    %1077 = vmatprep.subr.bf16.mxu0 0
    %1078 = vmatpush1.bf16.msra.mxu0 %v1064
    %1079 = vmatprep.subr.bf16.mxu0 0
    %1080 = vmatpush1.bf16.msra.mxu0 %v1065
    %1081 = vmatprep.subr.bf16.mxu0 0
    %1082 = vmatpush1.bf16.msra.mxu0 %v1066
    %1083 = vmatprep.subr.bf16.mxu0 0
    %1084 = vmatpush1.bf16.msra.mxu0 0
    %1085 = vmatprep.subr.bf16.mxu0 0
    %1086 = vmatpush1.bf16.msra.mxu0 0
    %1087 = vmatprep.subr.bf16.mxu0 0
    %1088 = vmatpush1.bf16.msra.mxu0 0
    %1089 = vmatprep.subr.bf16.mxu0 0
    %1090 = vmatpush1.bf16.msra.mxu0 0
    %1091 = vmatprep.subr.bf16.mxu0 0
    %1092 = vmatpush1.bf16.msra.mxu0 0
    %1093 = vmatprep.subr.bf16.mxu0 0
    %1094 = vmatpush1.bf16.msra.mxu0 0
    %1095 = vmatprep.subr.bf16.mxu0 0
    %1096 = vmatpush1.bf16.msra.mxu0 0
    %1097 = vmatprep.subr.bf16.mxu0 0
    %1098 = vmatpush1.bf16.msra.mxu0 0
    %1099 = vmatprep.mubr.bf16.mxu0 0
    %1100 = vmatmul.mubr.bf16.gmra.mrb[0].mxu0 %v580
    %v1101 = vpop.f32.mrb[0].mxu0
    %v1102 = vadd.f32 0.0, %v1101
    %v1103 = vpop.f32.mrb[0].mxu0
    %v1104 = vpop.f32.mrb[0].mxu0
    %v1105 = vadd.f32 0.0, %v1104
    %v1106 = vpop.f32.mrb[0].mxu0
    %1107 = vmatprep.mubr.bf16.mxu0 0
    %1108 = vmatmul.mubr.bf16.gmra.mrb[0].mxu0 %v581
    %v1109 = vpop.f32.mrb[0].mxu0
    %v1110 = vadd.f32 0.0, %v1109
    %v1111 = vpop.f32.mrb[0].mxu0
    %v1112 = vpop.f32.mrb[0].mxu0
    %v1113 = vadd.f32 0.0, %v1112
    %v1114 = vpop.f32.mrb[0].mxu0
    %1115 = vdwg.mxu0
    %v1116 = vadd.f32 %v885, %v1102
    %v1117 = vadd.f32 %v886, %v1105
    %v1118 = vadd.f32 %v887, %v1110
    %v1119 = vadd.f32 %v888, %v1113
    %s1120 = scalar_lea.vmem %s10, 64
    %v1121 = vld [vmem:[%s1120] sm:$0xf]
    %v1122 = vld [vmem:[%s1120 + $0x4] sm:$0xf]
    %v1123 = vld [vmem:[%s1120 + $0x8] sm:$0xf]
    %v1124 = vld [vmem:[%s1120 + $0xc] sm:$0xf]
    %v1125 = vld [vmem:[%s1120 + $0x10] sm:$0xf]
    %v1126 = vld [vmem:[%s1120 + $0x14] sm:$0xf]
    %v1127 = vld [vmem:[%s1120 + $0x18] sm:$0xf]
    %v1128 = vld [vmem:[%s1120 + $0x1c] sm:$0xf]
    %v1129 = vld [vmem:[%s1120 + $0x20] sm:$0xf]
    %v1130 = vld [vmem:[%s1120 + $0x24] sm:$0xf]
    %v1131 = vld [vmem:[%s1120 + $0x28] sm:$0xf]
    %v1132 = vld [vmem:[%s1120 + $0x2c] sm:$0xf]
    %v1133 = vld [vmem:[%s1120 + $0x30] sm:$0xf]
    %v1134 = vld [vmem:[%s1120 + $0x34] sm:$0xf]
    %v1135 = vld [vmem:[%s1120 + $0x38] sm:$0xf]
    %v1136 = vld [vmem:[%s1120 + $0x3c] sm:$0xf]
    %s1137 = scalar_lea.vmem %s11, 1
    %v1138 = vld [vmem:[%s1137] sm:$0x1]
    %s1139 = scalar_lea.vmem %s12, 64
    %v1140 = vld [vmem:[%s1139] sm:$0xf]
    %v1141 = vld [vmem:[%s1139 + $0x4] sm:$0xf]
    %v1142 = vld [vmem:[%s1139 + $0x8] sm:$0xf]
    %v1143 = vld [vmem:[%s1139 + $0xc] sm:$0xf]
    %v1144 = vld [vmem:[%s1139 + $0x10] sm:$0xf]
    %v1145 = vld [vmem:[%s1139 + $0x14] sm:$0xf]
    %v1146 = vld [vmem:[%s1139 + $0x18] sm:$0xf]
    %v1147 = vld [vmem:[%s1139 + $0x1c] sm:$0xf]
    %v1148 = vld [vmem:[%s1139 + $0x20] sm:$0xf]
    %v1149 = vld [vmem:[%s1139 + $0x24] sm:$0xf]
    %v1150 = vld [vmem:[%s1139 + $0x28] sm:$0xf]
    %v1151 = vld [vmem:[%s1139 + $0x2c] sm:$0xf]
    %v1152 = vld [vmem:[%s1139 + $0x30] sm:$0xf]
    %v1153 = vld [vmem:[%s1139 + $0x34] sm:$0xf]
    %v1154 = vld [vmem:[%s1139 + $0x38] sm:$0xf]
    %v1155 = vld [vmem:[%s1139 + $0x3c] sm:$0xf]
    %s1156 = scalar_lea.vmem %s13, 1
    %v1157 = vld [vmem:[%s1156] sm:$0x1]
    %v1158 = vpack.c.bf16 %v1117, %v1116
    %v1159 = vpack.c.bf16 %v1119, %v1118
    %v1161 = vlaneseq
    %v1162 = vshrl.u32 %v1161, 7
    %v1163 = vsub.s32 0, %v1162
    %v1164 = vrot.slane %v1138, %v1163
    %v1182 = vunpack.c.l.b16 %v1121
    %v1183 = vunpack.c.l.b16 %v1122
    %v1184 = vunpack.c.l.b16 %v1123
    %v1185 = vunpack.c.l.b16 %v1124
    %v1186 = vunpack.c.l.b16 %v1125
    %v1187 = vunpack.c.l.b16 %v1126
    %v1188 = vunpack.c.l.b16 %v1127
    %v1189 = vunpack.c.l.b16 %v1128
    %v1190 = vunpack.c.l.b16 %v1129
    %v1191 = vunpack.c.l.b16 %v1130
    %v1192 = vunpack.c.l.b16 %v1131
    %v1193 = vunpack.c.l.b16 %v1132
    %v1194 = vunpack.c.l.b16 %v1133
    %v1195 = vunpack.c.l.b16 %v1134
    %v1196 = vunpack.c.l.b16 %v1135
    %v1197 = vunpack.c.l.b16 %v1136
    %v1198 = vpack.c.b16 %v1183, %v1182
    %v1199 = vpack.c.b16 %v1185, %v1184
    %v1200 = vpack.c.b16 %v1187, %v1186
    %v1201 = vpack.c.b16 %v1189, %v1188
    %v1202 = vpack.c.b16 %v1191, %v1190
    %v1203 = vpack.c.b16 %v1193, %v1192
    %v1204 = vpack.c.b16 %v1195, %v1194
    %v1205 = vpack.c.b16 %v1197, %v1196
    %1214 = vmatprep.subr.bf16.mxu0 0
    %1215 = vmatpush1.bf16.msra.mxu0 %v1198
    %1216 = vmatprep.subr.bf16.mxu0 0
    %1217 = vmatpush1.bf16.msra.mxu0 %v1199
    %1218 = vmatprep.subr.bf16.mxu0 0
    %1219 = vmatpush1.bf16.msra.mxu0 %v1200
    %1220 = vmatprep.subr.bf16.mxu0 0
    %1221 = vmatpush1.bf16.msra.mxu0 %v1201
    %1222 = vmatprep.subr.bf16.mxu0 0
    %1223 = vmatpush1.bf16.msra.mxu0 %v1202
    %1224 = vmatprep.subr.bf16.mxu0 0
    %1225 = vmatpush1.bf16.msra.mxu0 %v1203
    %1226 = vmatprep.subr.bf16.mxu0 0
    %1227 = vmatpush1.bf16.msra.mxu0 %v1204
    %1228 = vmatprep.subr.bf16.mxu0 0
    %1229 = vmatpush1.bf16.msra.mxu0 %v1205
    %1230 = vmatprep.subr.bf16.mxu0 0
    %1231 = vmatpush1.bf16.msra.mxu0 0
    %1232 = vmatprep.subr.bf16.mxu0 0
    %1233 = vmatpush1.bf16.msra.mxu0 0
    %1234 = vmatprep.subr.bf16.mxu0 0
    %1235 = vmatpush1.bf16.msra.mxu0 0
    %1236 = vmatprep.subr.bf16.mxu0 0
    %1237 = vmatpush1.bf16.msra.mxu0 0
    %1238 = vmatprep.subr.bf16.mxu0 0
    %1239 = vmatpush1.bf16.msra.mxu0 0
    %1240 = vmatprep.subr.bf16.mxu0 0
    %1241 = vmatpush1.bf16.msra.mxu0 0
    %1242 = vmatprep.subr.bf16.mxu0 0
    %1243 = vmatpush1.bf16.msra.mxu0 0
    %1244 = vmatprep.subr.bf16.mxu0 0
    %1245 = vmatpush1.bf16.msra.mxu0 0
    %1246 = vmatprep.mubr.bf16.mxu0 0
    %1247 = vmatmul.mubr.bf16.gmra.mrb[0].mxu0 %v1158
    %v1248 = vpop.f32.mrb[0].mxu0
    %v1249 = vadd.f32 %v1164, %v1248
    %v1250 = vpop.f32.mrb[0].mxu0
    %v1251 = vpop.f32.mrb[0].mxu0
    %v1252 = vadd.f32 %v1164, %v1251
    %v1253 = vpop.f32.mrb[0].mxu0
    %1254 = vmatprep.mubr.bf16.mxu0 0
    %1255 = vmatmul.mubr.bf16.gmra.mrb[0].mxu0 %v1159
    %v1256 = vpop.f32.mrb[0].mxu0
    %v1257 = vadd.f32 %v1164, %v1256
    %v1258 = vpop.f32.mrb[0].mxu0
    %v1259 = vpop.f32.mrb[0].mxu0
    %v1260 = vadd.f32 %v1164, %v1259
    %v1261 = vpop.f32.mrb[0].mxu0
    %1262 = vdwg.mxu0
    %v1263 = vmax.f32 %v1249, 0.0
    %v1264 = vmax.f32 %v1252, 0.0
    %v1265 = vmax.f32 %v1257, 0.0
    %v1266 = vmax.f32 %v1260, 0.0
    %v1267 = vpack.c.bf16 %v1264, %v1263
    %v1268 = vpack.c.bf16 %v1266, %v1265
    %v1270 = vlaneseq
    %v1271 = vshrl.u32 %v1270, 7
    %v1272 = vsub.s32 0, %v1271
    %v1273 = vrot.slane %v1157, %v1272
    %v1291 = vunpack.c.l.b16 %v1140
    %v1292 = vunpack.c.l.b16 %v1141
    %v1293 = vunpack.c.l.b16 %v1142
    %v1294 = vunpack.c.l.b16 %v1143
    %v1295 = vunpack.c.l.b16 %v1144
    %v1296 = vunpack.c.l.b16 %v1145
    %v1297 = vunpack.c.l.b16 %v1146
    %v1298 = vunpack.c.l.b16 %v1147
    %v1299 = vunpack.c.l.b16 %v1148
    %v1300 = vunpack.c.l.b16 %v1149
    %v1301 = vunpack.c.l.b16 %v1150
    %v1302 = vunpack.c.l.b16 %v1151
    %v1303 = vunpack.c.l.b16 %v1152
    %v1304 = vunpack.c.l.b16 %v1153
    %v1305 = vunpack.c.l.b16 %v1154
    %v1306 = vunpack.c.l.b16 %v1155
    %v1307 = vpack.c.b16 %v1292, %v1291
    %v1308 = vpack.c.b16 %v1294, %v1293
    %v1309 = vpack.c.b16 %v1296, %v1295
    %v1310 = vpack.c.b16 %v1298, %v1297
    %v1311 = vpack.c.b16 %v1300, %v1299
    %v1312 = vpack.c.b16 %v1302, %v1301
    %v1313 = vpack.c.b16 %v1304, %v1303
    %v1314 = vpack.c.b16 %v1306, %v1305
    %1323 = vmatprep.subr.bf16.mxu0 0
    %1324 = vmatpush1.bf16.msra.mxu0 %v1307
    %1325 = vmatprep.subr.bf16.mxu0 0
    %1326 = vmatpush1.bf16.msra.mxu0 %v1308
    %1327 = vmatprep.subr.bf16.mxu0 0
    %1328 = vmatpush1.bf16.msra.mxu0 %v1309
    %1329 = vmatprep.subr.bf16.mxu0 0
    %1330 = vmatpush1.bf16.msra.mxu0 %v1310
    %1331 = vmatprep.subr.bf16.mxu0 0
    %1332 = vmatpush1.bf16.msra.mxu0 %v1311
    %1333 = vmatprep.subr.bf16.mxu0 0
    %1334 = vmatpush1.bf16.msra.mxu0 %v1312
    %1335 = vmatprep.subr.bf16.mxu0 0
    %1336 = vmatpush1.bf16.msra.mxu0 %v1313
    %1337 = vmatprep.subr.bf16.mxu0 0
    %1338 = vmatpush1.bf16.msra.mxu0 %v1314
    %1339 = vmatprep.subr.bf16.mxu0 0
    %1340 = vmatpush1.bf16.msra.mxu0 0
    %1341 = vmatprep.subr.bf16.mxu0 0
    %1342 = vmatpush1.bf16.msra.mxu0 0
    %1343 = vmatprep.subr.bf16.mxu0 0
    %1344 = vmatpush1.bf16.msra.mxu0 0
    %1345 = vmatprep.subr.bf16.mxu0 0
    %1346 = vmatpush1.bf16.msra.mxu0 0
    %1347 = vmatprep.subr.bf16.mxu0 0
    %1348 = vmatpush1.bf16.msra.mxu0 0
    %1349 = vmatprep.subr.bf16.mxu0 0
    %1350 = vmatpush1.bf16.msra.mxu0 0
    %1351 = vmatprep.subr.bf16.mxu0 0
    %1352 = vmatpush1.bf16.msra.mxu0 0
    %1353 = vmatprep.subr.bf16.mxu0 0
    %1354 = vmatpush1.bf16.msra.mxu0 0
    %1355 = vmatprep.mubr.bf16.mxu0 0
    %1356 = vmatmul.mubr.bf16.gmra.mrb[0].mxu0 %v1267
    %v1357 = vpop.f32.mrb[0].mxu0
    %v1358 = vadd.f32 %v1273, %v1357
    %v1359 = vpop.f32.mrb[0].mxu0
    %v1360 = vpop.f32.mrb[0].mxu0
    %v1361 = vadd.f32 %v1273, %v1360
    %v1362 = vpop.f32.mrb[0].mxu0
    %1363 = vmatprep.mubr.bf16.mxu0 0
    %1364 = vmatmul.mubr.bf16.gmra.mrb[0].mxu0 %v1268
    %v1365 = vpop.f32.mrb[0].mxu0
    %v1366 = vadd.f32 %v1273, %v1365
    %v1367 = vpop.f32.mrb[0].mxu0
    %v1368 = vpop.f32.mrb[0].mxu0
    %v1369 = vadd.f32 %v1273, %v1368
    %v1370 = vpop.f32.mrb[0].mxu0
    %1371 = vdwg.mxu0
    %v1372 = vmax.f32 %v1358, 0.0
    %v1373 = vmax.f32 %v1361, 0.0
    %v1374 = vmax.f32 %v1366, 0.0
    %v1375 = vmax.f32 %v1369, 0.0
    %v1376 = vsel %vm480, %v1372, -1e+30
    %v1377 = vsel %vm481, %v1373, -1e+30
    %v1378 = vsel %vm482, %v1374, -1e+30
    %v1379 = vsel %vm483, %v1375, -1e+30
    %v1380 = vmax.f32 %v1376, %v1377
    %v1381 = vmax.f32 %v1378, %v1379
    %v1382 = vmax.f32 %v1380, %v1381
    %v1383 = vrot.slane %v1382, 4
    %v1384 = vmax.f32 %v1382, %v1383
    %v1385 = vrot.slane %v1384, 2
    %v1386 = vmax.f32 %v1384, %v1385
    %v1387 = vrot.slane %v1386, 1
    %v1388 = vmax.f32 %v1386, %v1387
    %v1389 = vsel %vm509, %v1372, -1e+30
    %v1390 = vsel %vm510, %v1373, -1e+30
    %v1391 = vsel %vm511, %v1374, -1e+30
    %v1392 = vsel %vm512, %v1375, -1e+30
    %v1393 = vmax.f32 %v1389, %v1390
    %v1394 = vmax.f32 %v1391, %v1392
    %v1395 = vmax.f32 %v1393, %v1394
    %v1396 = vrot.slane %v1395, 4
    %v1397 = vmax.f32 %v1395, %v1396
    %v1398 = vrot.slane %v1397, 2
    %v1399 = vmax.f32 %v1397, %v1398
    %v1400 = vrot.slane %v1399, 1
    %v1401 = vmax.f32 %v1399, %v1400
    %v1402 = vsel %vm526, %v1388, %v1401
    %v1403 = vpack.c.bf16 %v1402, %v1402
    %s1404 = scalar_lea.vmem %s14, 64
    %v1405 = vld [vmem:[%s1404] sm:$0xf]
    %v1406 = vld [vmem:[%s1404 + $0x4] sm:$0xf]
    %v1407 = vld [vmem:[%s1404 + $0x8] sm:$0xf]
    %v1408 = vld [vmem:[%s1404 + $0xc] sm:$0xf]
    %v1409 = vld [vmem:[%s1404 + $0x10] sm:$0xf]
    %v1410 = vld [vmem:[%s1404 + $0x14] sm:$0xf]
    %v1411 = vld [vmem:[%s1404 + $0x18] sm:$0xf]
    %v1412 = vld [vmem:[%s1404 + $0x1c] sm:$0xf]
    %v1413 = vld [vmem:[%s1404 + $0x20] sm:$0xf]
    %v1414 = vld [vmem:[%s1404 + $0x24] sm:$0xf]
    %v1415 = vld [vmem:[%s1404 + $0x28] sm:$0xf]
    %v1416 = vld [vmem:[%s1404 + $0x2c] sm:$0xf]
    %v1417 = vld [vmem:[%s1404 + $0x30] sm:$0xf]
    %v1418 = vld [vmem:[%s1404 + $0x34] sm:$0xf]
    %v1419 = vld [vmem:[%s1404 + $0x38] sm:$0xf]
    %v1420 = vld [vmem:[%s1404 + $0x3c] sm:$0xf]
    %s1421 = scalar_lea.vmem %s15, 1
    %v1422 = vld [vmem:[%s1421] sm:$0x1]
    %v1424 = vlaneseq
    %v1425 = vshrl.u32 %v1424, 7
    %v1426 = vsub.s32 0, %v1425
    %v1427 = vrot.slane %v1422, %v1426
    %v1445 = vunpack.c.l.b16 %v1405
    %v1446 = vunpack.c.l.b16 %v1406
    %v1447 = vunpack.c.l.b16 %v1407
    %v1448 = vunpack.c.l.b16 %v1408
    %v1449 = vunpack.c.l.b16 %v1409
    %v1450 = vunpack.c.l.b16 %v1410
    %v1451 = vunpack.c.l.b16 %v1411
    %v1452 = vunpack.c.l.b16 %v1412
    %v1453 = vunpack.c.l.b16 %v1413
    %v1454 = vunpack.c.l.b16 %v1414
    %v1455 = vunpack.c.l.b16 %v1415
    %v1456 = vunpack.c.l.b16 %v1416
    %v1457 = vunpack.c.l.b16 %v1417
    %v1458 = vunpack.c.l.b16 %v1418
    %v1459 = vunpack.c.l.b16 %v1419
    %v1460 = vunpack.c.l.b16 %v1420
    %v1461 = vpack.c.b16 %v1446, %v1445
    %v1462 = vpack.c.b16 %v1448, %v1447
    %v1463 = vpack.c.b16 %v1450, %v1449
    %v1464 = vpack.c.b16 %v1452, %v1451
    %v1465 = vpack.c.b16 %v1454, %v1453
    %v1466 = vpack.c.b16 %v1456, %v1455
    %v1467 = vpack.c.b16 %v1458, %v1457
    %v1468 = vpack.c.b16 %v1460, %v1459
    %1477 = vmatprep.subr.bf16.mxu0 0
    %1478 = vmatpush1.bf16.msra.mxu0 %v1461
    %1479 = vmatprep.subr.bf16.mxu0 0
    %1480 = vmatpush1.bf16.msra.mxu0 %v1462
    %1481 = vmatprep.subr.bf16.mxu0 0
    %1482 = vmatpush1.bf16.msra.mxu0 %v1463
    %1483 = vmatprep.subr.bf16.mxu0 0
    %1484 = vmatpush1.bf16.msra.mxu0 %v1464
    %1485 = vmatprep.subr.bf16.mxu0 0
    %1486 = vmatpush1.bf16.msra.mxu0 %v1465
    %1487 = vmatprep.subr.bf16.mxu0 0
    %1488 = vmatpush1.bf16.msra.mxu0 %v1466
    %1489 = vmatprep.subr.bf16.mxu0 0
    %1490 = vmatpush1.bf16.msra.mxu0 %v1467
    %1491 = vmatprep.subr.bf16.mxu0 0
    %1492 = vmatpush1.bf16.msra.mxu0 %v1468
    %1493 = vmatprep.subr.bf16.mxu0 0
    %1494 = vmatpush1.bf16.msra.mxu0 0
    %1495 = vmatprep.subr.bf16.mxu0 0
    %1496 = vmatpush1.bf16.msra.mxu0 0
    %1497 = vmatprep.subr.bf16.mxu0 0
    %1498 = vmatpush1.bf16.msra.mxu0 0
    %1499 = vmatprep.subr.bf16.mxu0 0
    %1500 = vmatpush1.bf16.msra.mxu0 0
    %1501 = vmatprep.subr.bf16.mxu0 0
    %1502 = vmatpush1.bf16.msra.mxu0 0
    %1503 = vmatprep.subr.bf16.mxu0 0
    %1504 = vmatpush1.bf16.msra.mxu0 0
    %1505 = vmatprep.subr.bf16.mxu0 0
    %1506 = vmatpush1.bf16.msra.mxu0 0
    %1507 = vmatprep.subr.bf16.mxu0 0
    %1508 = vmatpush1.bf16.msra.mxu0 0
    %1509 = vmatprep.mubr.bf16.mxu0 0
    %1510 = vmatmul.mubr.bf16.gmra.mrb[0].mxu0 %v1403
    %v1511 = vpop.f32.mrb[0].mxu0
    %v1512 = vadd.f32 %v1427, %v1511
    %v1513 = vpop.f32.mrb[0].mxu0
    %v1514 = vpop.f32.mrb[0].mxu0
    %v1515 = vpop.f32.mrb[0].mxu0
    %1516 = vdwg.mxu0
    %v1517 = vadd.f32 %v1028, %v1512
    %1518 = vst [vmem:[#allocation6] sm:$0x3] %v1517
    // Predicated region
    $region70: #{net_hsp_gin_forward.1} parent=1 // pred_check
      _
    $region71: #{net_hsp_gin_forward.1} parent=1 // pred_check_branch
      %1520 = sbr.rel (0) target = $region73
    $region72: #{net_hsp_gin_forward.1} parent=1 // pred_region
      %s1522 = ssub.s32 32, 32
      %1523 = vsyncadd [#allocation4], %s1522
      %s1525 = sshll.u32 [#allocation6], 4
      %s1526 = int_to_ptr.vmem [resolvable:$true] %s1525
      %1528 = dma.vmem_to_hbm [thread:$0]  %s1526, 32, %s16, [#allocation4]
    $region73: #{net_hsp_gin_forward.1} parent=1 // pred_fallthru
      _
    // Predicated region
    $region74: #{net_hsp_gin_forward.1} parent=1 // pred_check
      _
    $region75: #{net_hsp_gin_forward.1} parent=1 // pred_check_branch
      %1530 = sbr.rel (0) target = $region77
    $region76: #{net_hsp_gin_forward.1} parent=1 // pred_region
      %1531 = dma.done [#allocation4], 32
    $region77: #{net_hsp_gin_forward.1} parent=1 // pred_fallthru
      _
    %1532 = vsyncpa [#allocation4], 1
    %1533 = vsyncpa [#allocation5], 1

</llo_original>
